<compile_context>
chip_gen: v5e
topology: v5e:2x2
jax: 0.10.0
libtpu: 0.0.40
codegen_flags: <defaults>
</compile_context>

<pallas_src>
import math
import functools

import jax
import jax.numpy as jnp
from jax import lax
from jax.experimental import pallas as pl
from jax.experimental.pallas import tpu as pltpu


def _round_up(a, b):
    return -(-a // b) * b


# ---------------------------------------------------------------------------
# Kernel 1: fused adapter MLP    y = relu(x @ w1) @ w2     (both Linears bias-free)
# ---------------------------------------------------------------------------

def _adapter_mlp_kernel(x_ref, w1_ref, w2_ref, o_ref):
    # bf16 operands on the MXU, f32 accumulation; the hidden activation stays on-chip.
    h = jnp.dot(x_ref[...], w1_ref[...], preferred_element_type=jnp.float32)
    h = jnp.maximum(h, 0.0).astype(jnp.bfloat16)
    y = jnp.dot(h, w2_ref[...], preferred_element_type=jnp.float32)
    o_ref[...] = y.astype(o_ref.dtype)


def adapter_mlp(x2d, w1, w2, *, max_tile_m=512):
    """relu(x2d @ w1) @ w2 for x2d: (M, C).  Returns (M, C) float32."""
    M, C = x2d.shape
    Hd = w1.shape[1]
    tm = min(max_tile_m, _round_up(M, 16))       # 16-row aligned (bf16 sublane packing)
    Mp = _round_up(M, tm)
    if Mp != M:
        x2d = jnp.pad(x2d, ((0, Mp - M), (0, 0)))
    out = pl.pallas_call(
        _adapter_mlp_kernel,
        out_shape=jax.ShapeDtypeStruct((Mp, C), jnp.float32),
        grid_spec=pltpu.PrefetchScalarGridSpec(
            num_scalar_prefetch=0,
            grid=(Mp // tm,),
            in_specs=[pl.BlockSpec((tm, C), lambda i: (i, 0)),    # x tile (pipelined)
                      pl.BlockSpec((C, Hd), lambda i: (0, 0)),    # w1 resident
                      pl.BlockSpec((Hd, C), lambda i: (0, 0))],   # w2 resident
            out_specs=pl.BlockSpec((tm, C), lambda i: (i, 0))),
        compiler_params=pltpu.CompilerParams(
            dimension_semantics=("parallel",),
            vmem_limit_bytes=32 * 1024 * 1024),
    )(x2d.astype(jnp.bfloat16), w1.astype(jnp.bfloat16), w2.astype(jnp.bfloat16))
    return out[:M] if Mp != M else out


# ---------------------------------------------------------------------------
# Kernel 2: fused spectral math — amplitudes, phase cos/sin, weighted mix, compose scale
# ---------------------------------------------------------------------------

def _spectral_mix_kernel(w_ref, reo_ref, imo_ref, rea_ref, ima_ref,
                         reout_ref, imout_ref, *, scale):
    t = 1e-5

    def rd(v):  # replace_denormals: values in (-t, t) -> +t
        return jnp.where((v < t) & (v > -t), t, v)

    reo = reo_ref[...]
    imo = imo_ref[...]
    rea = rea_ref[...]
    ima = ima_ref[...]

    amp_o = jnp.sqrt(rd(reo * reo + imo * imo))
    amp_a = jnp.sqrt(rd(rea * rea + ima * ima))
    amp = (amp_a * w_ref[0] + amp_o * w_ref[1]) * scale   # mix + compose()'s 1/sqrt(H*W)

    # phase_ori = atan2(imo, rd(reo)); its cos/sin via the exact identity
    #   cos(atan2(y, x)) = x / hypot(x, y),  sin(atan2(y, x)) = y / hypot(x, y)
    rre = rd(reo)
    inv_h = lax.rsqrt(rre * rre + imo * imo)              # EUP; hypot >= 1e-5 after the clamp
    reout_ref[...] = (rre * inv_h) * amp
    imout_ref[...] = (imo * inv_h) * amp


def spectral_mix(re_o, im_o, re_a, im_a, wvec, scale):
    R, L = re_o.shape
    if R <= 8:
        rt, Rp = R, R
    else:
        budget_rows = (8 * 1024 * 1024) // (14 * 4 * max(L, 1))   # ~6 tensors x 2 buffers
        rt = max(8, min(64, (budget_rows // 8) * 8))
        rt = min(rt, _round_up(R, 8))
        Rp = _round_up(R, rt)

    def padr(a):
        return jnp.pad(a, ((0, Rp - R), (0, 0))) if Rp != R else a

    vspec = lambda: pl.BlockSpec((rt, L), lambda i: (i, 0))
    re_c, im_c = pl.pallas_call(
        functools.partial(_spectral_mix_kernel, scale=scale),
        out_shape=(jax.ShapeDtypeStruct((Rp, L), jnp.float32),
                   jax.ShapeDtypeStruct((Rp, L), jnp.float32)),
        grid_spec=pltpu.PrefetchScalarGridSpec(
            num_scalar_prefetch=0,
            grid=(Rp // rt,),
            in_specs=[pl.BlockSpec(memory_space=pltpu.MemorySpace.SMEM),  # (2,) mix weights
                      vspec(), vspec(), vspec(), vspec()],
            out_specs=(vspec(), vspec())),
        compiler_params=pltpu.CompilerParams(
            dimension_semantics=("parallel",),
            vmem_limit_bytes=32 * 1024 * 1024),
    )(wvec.astype(jnp.float32), padr(re_o), padr(im_o), padr(re_a), padr(im_a))
    if Rp != R:
        re_c, im_c = re_c[:R], im_c[:R]
    return re_c, im_c


# ---------------------------------------------------------------------------
# Adapter_linear forward
# ---------------------------------------------------------------------------

def adapter_linear_forward(x, params):
    """x: (N, C, H, W) with W == c_in (the Linear acts on the last dim; fft2 on (H, W))."""
    N, C, H, W = x.shape
    x = x.astype(jnp.float32)
    weight = jax.nn.softmax(params['mix'] / 0.1)             # T = 0.1

    # fc: Linear -> ReLU -> Linear, one fused Pallas kernel
    x_adapt = adapter_mlp(x.reshape(-1, W), params['w1'], params['w2']).reshape(N, C, H, W)

    # TODO(synk): fft2 / irfft2 stay in XLA — no Pallas FFT primitive on TPU.
    # rfft2 == fft2[..., :W//2+1], which is exactly what irfft2(s=(H, W)) consumes.
    f_ori = jnp.fft.rfft2(x, axes=(-2, -1))                   # norm='backward'
    f_adp = jnp.fft.rfft2(x_adapt, axes=(-2, -1))
    Wc = f_ori.shape[-1]

    flat = lambda a: a.reshape(N * C, H * Wc)                 # lane-dense 2-D view
    re_c, im_c = spectral_mix(flat(jnp.real(f_ori)), flat(jnp.imag(f_ori)),
                              flat(jnp.real(f_adp)), flat(jnp.imag(f_adp)),
                              weight, 1.0 / math.sqrt(H * W))

    z = lax.complex(re_c, im_c).reshape(N, C, H, Wc)
    return jnp.fft.irfft2(z, s=(H, W), axes=(-2, -1), norm='ortho')


# ---------------------------------------------------------------------------
# Pure-JAX reference (faithful transcription of the PyTorch module) for validation
# ---------------------------------------------------------------------------

def _replace_denormals(v, threshold=1e-5):
    return jnp.where((v < threshold) & (v > -threshold), threshold, v)


def reference_forward(x, params):
    weight = jax.nn.softmax(params['mix'] / 0.1)
    h = jnp.maximum(x @ params['w1'], 0.0)
    x_adapt = h @ params['w2']

    def decompose(v):
        f = jnp.fft.fft2(v, axes=(-2, -1), norm='backward')
        re, im = jnp.real(f), jnp.imag(f)
        amp = jnp.sqrt(_replace_denormals(re * re + im * im))
        pha = jnp.arctan2(im, _replace_denormals(re))
        return pha, amp

    pha_o, amp_o = decompose(x)
    _, amp_a = decompose(x_adapt)
    amp = amp_a * weight[0] + amp_o * weight[1]
    H, W = x.shape[-2], x.shape[-1]
    z = (jnp.cos(pha_o) * amp + 1j * jnp.sin(pha_o) * amp) / math.sqrt(H * W)
    return jnp.fft.irfft2(z, s=(H, W), axes=(-2, -1), norm='ortho')


# ---------------------------------------------------------------------------
# Parameters & main
# ---------------------------------------------------------------------------

def init_params(key, c_in, reduction=4):
    hidden = c_in // reduction
    k1, k2 = jax.random.split(key)
    b1 = 1.0 / math.sqrt(c_in)
    b2 = 1.0 / math.sqrt(hidden)
    return dict(
        w1=jax.random.uniform(k1, (c_in, hidden), jnp.float32, -b1, b1),  # Linear #1 (no bias)
        w2=jax.random.uniform(k2, (hidden, c_in), jnp.float32, -b2, b2),  # Linear #2 (no bias)
        mix=jnp.zeros((2,), jnp.float32))                                  # nn.Parameter(zeros(2))


if __name__ == "__main__":
    key = jax.random.PRNGKey(0)
    kx, kp = jax.random.split(key)
    N, C, H, W = 2, 4, 16, 128            # c_in = W = 128, reduction 4 -> hidden 32
    x = jax.random.normal(kx, (N, C, H, W), jnp.float32)
    params = init_params(kp, c_in=W, reduction=4)

    fwd = jax.jit(adapter_linear_forward)
    out = jax.block_until_ready(fwd(x, params))

    assert out.shape == (N, C, H, W), out.shape
    assert bool(jnp.all(jnp.isfinite(out)))

    ref = reference_forward(x, params)
    max_err = float(jnp.max(jnp.abs(out - ref)))
    assert max_err < 5e-2, f"max |pallas - reference| = {max_err}"
    print("KERNEL_OK")
</pallas_src>

<mosaic_0001>
module attributes {stable_mosaic.version = 11 : i64} {
  func.func @_adapter_mlp_kernel(%arg0: i32, %arg1: memref<128x128xbf16, #tpu.memory_space<vmem>>, %arg2: memref<128x32xbf16, #tpu.memory_space<vmem>>, %arg3: memref<32x128xbf16, #tpu.memory_space<vmem>>, %arg4: memref<128x128xf32, #tpu.memory_space<vmem>>) attributes {dimension_semantics = [#tpu.dimension_semantics<parallel>], iteration_bounds = array<i64: 1>, scalar_prefetch = 0 : i64, scratch_operands = 0 : i64, tpu.core_type = #tpu.core_type<tc>, window_params = [{transform_indices = @transform_0, window_bounds = array<i64: 128, 128>}, {pipeline_mode = #tpu.pipeline_mode<synchronous>, transform_indices = @transform_1, window_bounds = array<i64: 128, 32>}, {pipeline_mode = #tpu.pipeline_mode<synchronous>, transform_indices = @transform_2, window_bounds = array<i64: 32, 128>}, {transform_indices = @transform_3, window_bounds = array<i64: 128, 128>}]} {
    %c0 = arith.constant 0 : index
    %c0_0 = arith.constant 0 : index
    %0 = vector.load %arg1[%c0, %c0_0] : memref<128x128xbf16, #tpu.memory_space<vmem>>, vector<128x128xbf16>
    %c0_1 = arith.constant 0 : index
    %c0_2 = arith.constant 0 : index
    %1 = vector.load %arg2[%c0_1, %c0_2] : memref<128x32xbf16, #tpu.memory_space<vmem>>, vector<128x32xbf16>
    %cst = arith.constant dense<0.000000e+00> : vector<128x32xf32>
    %2 = tpu.matmul %0, %1, %cst {dimension_numbers = #tpu.dot_dimension_numbers<[1], [0], [0], [1], [0, 0, 1, 1], [], []>} : vector<128x128xbf16>, vector<128x32xbf16>, vector<128x32xf32> -> vector<128x32xf32>
    %cst_3 = arith.constant 0.000000e+00 : f32
    %3 = vector.broadcast %cst_3 : f32 to vector<128x32xf32>
    %4 = arith.maximumf %2, %3 : vector<128x32xf32>
    %5 = arith.truncf %4 : vector<128x32xf32> to vector<128x32xbf16>
    %c0_4 = arith.constant 0 : index
    %c0_5 = arith.constant 0 : index
    %6 = vector.load %arg3[%c0_4, %c0_5] : memref<32x128xbf16, #tpu.memory_space<vmem>>, vector<32x128xbf16>
    %cst_6 = arith.constant dense<0.000000e+00> : vector<128x128xf32>
    %7 = tpu.matmul %5, %6, %cst_6 {dimension_numbers = #tpu.dot_dimension_numbers<[1], [0], [0], [1], [0, 0, 1, 1], [], []>} : vector<128x32xbf16>, vector<32x128xbf16>, vector<128x128xf32> -> vector<128x128xf32>
    %c0_7 = arith.constant 0 : index
    %c0_8 = arith.constant 0 : index
    %8 = vector.load %arg4[%c0_7, %c0_8] : memref<128x128xf32, #tpu.memory_space<vmem>>, vector<128x128xf32>
    tpu.vector_store %arg4[%c0_7, %c0_8], %7 {strides = array<i32>} : memref<128x128xf32, #tpu.memory_space<vmem>>, vector<128x128xf32>,
    return
  }
  func.func @transform_0(%arg0: i32) -> (i32, i32) {
    %c0_i32 = arith.constant 0 : i32
    %c0_i32_0 = arith.constant 0 : i32
    return %arg0, %c0_i32 : i32, i32
  }
  func.func @transform_1(%arg0: i32) -> (i32, i32) {
    %c0_i32 = arith.constant 0 : i32
    %c0_i32_0 = arith.constant 0 : i32
    %c0_i32_1 = arith.constant 0 : i32
    return %c0_i32, %c0_i32_0 : i32, i32
  }
  func.func @transform_2(%arg0: i32) -> (i32, i32) {
    %c0_i32 = arith.constant 0 : i32
    %c0_i32_0 = arith.constant 0 : i32
    %c0_i32_1 = arith.constant 0 : i32
    return %c0_i32, %c0_i32_0 : i32, i32
  }
  func.func @transform_3(%arg0: i32) -> (i32, i32) {
    %c0_i32 = arith.constant 0 : i32
    %c0_i32_0 = arith.constant 0 : i32
    return %arg0, %c0_i32 : i32, i32
  }
}

module attributes {stable_mosaic.version = 11 : i64} {
  func.func @_spectral_mix_kernel(%arg0: i32, %arg1: memref<2xf32, #tpu.memory_space<smem>>, %arg2: memref<8x1040xf32, #tpu.memory_space<vmem>>, %arg3: memref<8x1040xf32, #tpu.memory_space<vmem>>, %arg4: memref<8x1040xf32, #tpu.memory_space<vmem>>, %arg5: memref<8x1040xf32, #tpu.memory_space<vmem>>, %arg6: memref<8x1040xf32, #tpu.memory_space<vmem>>, %arg7: memref<8x1040xf32, #tpu.memory_space<vmem>>) attributes {dimension_semantics = [#tpu.dimension_semantics<parallel>], iteration_bounds = array<i64: 1>, scalar_prefetch = 0 : i64, scratch_operands = 0 : i64, tpu.core_type = #tpu.core_type<tc>, window_params = [{transform_indices = @transform_0, window_bounds = array<i64: 2>}, {transform_indices = @transform_1, window_bounds = array<i64: 8, 1040>}, {transform_indices = @transform_2, window_bounds = array<i64: 8, 1040>}, {transform_indices = @transform_3, window_bounds = array<i64: 8, 1040>}, {transform_indices = @transform_4, window_bounds = array<i64: 8, 1040>}, {transform_indices = @transform_5, window_bounds = array<i64: 8, 1040>}, {transform_indices = @transform_6, window_bounds = array<i64: 8, 1040>}]} {
    %c0 = arith.constant 0 : index
    %c0_0 = arith.constant 0 : index
    %0 = vector.load %arg2[%c0, %c0_0] : memref<8x1040xf32, #tpu.memory_space<vmem>>, vector<8x1040xf32>
    %c0_1 = arith.constant 0 : index
    %c0_2 = arith.constant 0 : index
    %1 = vector.load %arg3[%c0_1, %c0_2] : memref<8x1040xf32, #tpu.memory_space<vmem>>, vector<8x1040xf32>
    %c0_3 = arith.constant 0 : index
    %c0_4 = arith.constant 0 : index
    %2 = vector.load %arg4[%c0_3, %c0_4] : memref<8x1040xf32, #tpu.memory_space<vmem>>, vector<8x1040xf32>
    %c0_5 = arith.constant 0 : index
    %c0_6 = arith.constant 0 : index
    %3 = vector.load %arg5[%c0_5, %c0_6] : memref<8x1040xf32, #tpu.memory_space<vmem>>, vector<8x1040xf32>
    %4 = arith.mulf %0, %0 : vector<8x1040xf32>
    %5 = arith.mulf %1, %1 : vector<8x1040xf32>
    %6 = arith.addf %4, %5 : vector<8x1040xf32>
    %cst = arith.constant 9.99999974E-6 : f32
    %7 = vector.broadcast %cst : f32 to vector<8x1040xf32>
    %8 = arith.cmpf olt, %6, %7 : vector<8x1040xf32>
    %cst_7 = arith.constant -9.99999974E-6 : f32
    %9 = vector.broadcast %cst_7 : f32 to vector<8x1040xf32>
    %10 = arith.cmpf ogt, %6, %9 : vector<8x1040xf32>
    %11 = arith.andi %8, %10 : vector<8x1040xi1>
    %cst_8 = arith.constant 9.99999974E-6 : f32
    %12 = vector.broadcast %cst_8 : f32 to vector<8x1040xf32>
    %13 = arith.select %11, %12, %6 : vector<8x1040xi1>, vector<8x1040xf32>
    %14 = math.sqrt %13 : vector<8x1040xf32>
    %15 = arith.mulf %2, %2 : vector<8x1040xf32>
    %16 = arith.mulf %3, %3 : vector<8x1040xf32>
    %17 = arith.addf %15, %16 : vector<8x1040xf32>
    %cst_9 = arith.constant 9.99999974E-6 : f32
    %18 = vector.broadcast %cst_9 : f32 to vector<8x1040xf32>
    %19 = arith.cmpf olt, %17, %18 : vector<8x1040xf32>
    %cst_10 = arith.constant -9.99999974E-6 : f32
    %20 = vector.broadcast %cst_10 : f32 to vector<8x1040xf32>
    %21 = arith.cmpf ogt, %17, %20 : vector<8x1040xf32>
    %22 = arith.andi %19, %21 : vector<8x1040xi1>
    %cst_11 = arith.constant 9.99999974E-6 : f32
    %23 = vector.broadcast %cst_11 : f32 to vector<8x1040xf32>
    %24 = arith.select %22, %23, %17 : vector<8x1040xi1>, vector<8x1040xf32>
    %25 = math.sqrt %24 : vector<8x1040xf32>
    %c0_12 = arith.constant 0 : index
    %26 = memref.load %arg1[%c0_12] : memref<2xf32, #tpu.memory_space<smem>>
    %27 = vector.broadcast %26 : f32 to vector<8x1040xf32>
    %28 = arith.mulf %25, %27 : vector<8x1040xf32>
    %c1 = arith.constant 1 : index
    %29 = memref.load %arg1[%c1] : memref<2xf32, #tpu.memory_space<smem>>
    %30 = vector.broadcast %29 : f32 to vector<8x1040xf32>
    %31 = arith.mulf %14, %30 : vector<8x1040xf32>
    %32 = arith.addf %28, %31 : vector<8x1040xf32>
    %cst_13 = arith.constant 0.0220970865 : f32
    %33 = vector.broadcast %cst_13 : f32 to vector<8x1040xf32>
    %34 = arith.mulf %32, %33 : vector<8x1040xf32>
    %cst_14 = arith.constant 9.99999974E-6 : f32
    %35 = vector.broadcast %cst_14 : f32 to vector<8x1040xf32>
    %36 = arith.cmpf olt, %0, %35 : vector<8x1040xf32>
    %cst_15 = arith.constant -9.99999974E-6 : f32
    %37 = vector.broadcast %cst_15 : f32 to vector<8x1040xf32>
    %38 = arith.cmpf ogt, %0, %37 : vector<8x1040xf32>
    %39 = arith.andi %36, %38 : vector<8x1040xi1>
    %cst_16 = arith.constant 9.99999974E-6 : f32
    %40 = vector.broadcast %cst_16 : f32 to vector<8x1040xf32>
    %41 = arith.select %39, %40, %0 : vector<8x1040xi1>, vector<8x1040xf32>
    %42 = arith.mulf %41, %41 : vector<8x1040xf32>
    %43 = arith.mulf %1, %1 : vector<8x1040xf32>
    %44 = arith.addf %42, %43 : vector<8x1040xf32>
    %45 = math.rsqrt %44 : vector<8x1040xf32>
    %46 = arith.mulf %41, %45 : vector<8x1040xf32>
    %47 = arith.mulf %46, %34 : vector<8x1040xf32>
    %c0_17 = arith.constant 0 : index
    %c0_18 = arith.constant 0 : index
    %48 = vector.load %arg6[%c0_17, %c0_18] : memref<8x1040xf32, #tpu.memory_space<vmem>>, vector<8x1040xf32>
    tpu.vector_store %arg6[%c0_17, %c0_18], %47 {strides = array<i32>} : memref<8x1040xf32, #tpu.memory_space<vmem>>, vector<8x1040xf32>,
    %49 = arith.mulf %1, %45 : vector<8x1040xf32>
    %50 = arith.mulf %49, %34 : vector<8x1040xf32>
    %c0_19 = arith.constant 0 : index
    %c0_20 = arith.constant 0 : index
    %51 = vector.load %arg7[%c0_19, %c0_20] : memref<8x1040xf32, #tpu.memory_space<vmem>>, vector<8x1040xf32>
    tpu.vector_store %arg7[%c0_19, %c0_20], %50 {strides = array<i32>} : memref<8x1040xf32, #tpu.memory_space<vmem>>, vector<8x1040xf32>,
    return
  }
  func.func @transform_0(%arg0: i32) -> i32 {
    %c0_i32 = arith.constant 0 : i32
    %c0_i32_0 = arith.constant 0 : i32
    return %c0_i32 : i32
  }
  func.func @transform_1(%arg0: i32) -> (i32, i32) {
    %c0_i32 = arith.constant 0 : i32
    %c0_i32_0 = arith.constant 0 : i32
    return %arg0, %c0_i32 : i32, i32
  }
  func.func @transform_2(%arg0: i32) -> (i32, i32) {
    %c0_i32 = arith.constant 0 : i32
    %c0_i32_0 = arith.constant 0 : i32
    return %arg0, %c0_i32 : i32, i32
  }
  func.func @transform_3(%arg0: i32) -> (i32, i32) {
    %c0_i32 = arith.constant 0 : i32
    %c0_i32_0 = arith.constant 0 : i32
    return %arg0, %c0_i32 : i32, i32
  }
  func.func @transform_4(%arg0: i32) -> (i32, i32) {
    %c0_i32 = arith.constant 0 : i32
    %c0_i32_0 = arith.constant 0 : i32
    return %arg0, %c0_i32 : i32, i32
  }
  func.func @transform_5(%arg0: i32) -> (i32, i32) {
    %c0_i32 = arith.constant 0 : i32
    %c0_i32_0 = arith.constant 0 : i32
    return %arg0, %c0_i32 : i32, i32
  }
  func.func @transform_6(%arg0: i32) -> (i32, i32) {
    %c0_i32 = arith.constant 0 : i32
    %c0_i32_0 = arith.constant 0 : i32
    return %arg0, %c0_i32 : i32, i32
  }
}

</mosaic_0001>

<llo_original>
// kernel: adapter_linear_forward.2
$region0: #{adapter_linear_forward.2}
  #allocation0 [shape = 'u32[]', space=smem, size = 0x4, offset = 0x4, fixed_abs, tag = 'smem constant byte address 0x4 - core index']
  #allocation1 [shape = 'u32[72,128]{1,0:T(1,128)}', space=vmem, size = 0x9000, scoped, tag = 'internal scratch']
  %s0 = inlined_call_operand.vmem [shape: bf16[128,128], index: 0, kind: input, shape index: {}]
  %s1 = inlined_call_operand.vmem [shape: bf16[128,32], index: 1, kind: input, shape index: {}]
  %s2 = inlined_call_operand.vmem [shape: bf16[32,128], index: 2, kind: input, shape index: {}]
  %s3 = inlined_call_operand.vmem [shape: f32[128,128], index: 3, kind: output, shape index: {}]
  %s4 = sld [smem:[#allocation0]]
  $region22: #{adapter_linear_forward.2} parent=0
    _
  %s6 = ssub.s32 1, %s4
  %s7 = scalar_select 0, %s6, %s4
  // Predicated region
  $region2: #{adapter_linear_forward.2} parent=0 // pred_check
    _
  $region3: #{adapter_linear_forward.2} parent=0 // pred_check_branch
    %9 = sbr.rel (0) target = $region5
  $region4: #{adapter_linear_forward.2} parent=0 // pred_region
    _
  $region5: #{adapter_linear_forward.2} parent=0 // pred_fallthru
    _
  // Predicated region
  $region6: #{adapter_linear_forward.2} parent=0 // pred_check
    _
  $region7: #{adapter_linear_forward.2} parent=0 // pred_check_branch
    %11 = sbr.rel (0) target = $region9
  $region8: #{adapter_linear_forward.2} parent=0 // pred_region
    _
  $region9: #{adapter_linear_forward.2} parent=0 // pred_fallthru
    _
  // Predicated region
  $region10: #{adapter_linear_forward.2} parent=0 // pred_check
    _
  $region11: #{adapter_linear_forward.2} parent=0 // pred_check_branch
    %13 = sbr.rel (0) target = $region13
  $region12: #{adapter_linear_forward.2} parent=0 // pred_region
    _
  $region13: #{adapter_linear_forward.2} parent=0 // pred_fallthru
    _
  %v15 = vld [vmem:[%s0] sm:$0xf]
  %v16 = vld [vmem:[%s0 + $0x4] sm:$0xf]
  %v17 = vld [vmem:[%s0 + $0x8] sm:$0xf]
  %v18 = vld [vmem:[%s0 + $0xc] sm:$0xf]
  %v19 = vld [vmem:[%s0 + $0x10] sm:$0xf]
  %v20 = vld [vmem:[%s0 + $0x14] sm:$0xf]
  %v21 = vld [vmem:[%s0 + $0x18] sm:$0xf]
  %v22 = vld [vmem:[%s0 + $0x1c] sm:$0xf]
  %v23 = vld [vmem:[%s0 + $0x20] sm:$0xf]
  %v24 = vld [vmem:[%s0 + $0x24] sm:$0xf]
  %v25 = vld [vmem:[%s0 + $0x28] sm:$0xf]
  %v26 = vld [vmem:[%s0 + $0x2c] sm:$0xf]
  %v27 = vld [vmem:[%s0 + $0x30] sm:$0xf]
  %v28 = vld [vmem:[%s0 + $0x34] sm:$0xf]
  %v29 = vld [vmem:[%s0 + $0x38] sm:$0xf]
  %v30 = vld [vmem:[%s0 + $0x3c] sm:$0xf]
  %v31 = vld [vmem:[%s1] sm:$0xf]
  %v32 = vld [vmem:[%s1 + $0x4] sm:$0xf]
  %v33 = vld [vmem:[%s1 + $0x8] sm:$0xf]
  %v34 = vld [vmem:[%s1 + $0xc] sm:$0xf]
  %v35 = vld [vmem:[%s1 + $0x10] sm:$0xf]
  %v36 = vld [vmem:[%s1 + $0x14] sm:$0xf]
  %v37 = vld [vmem:[%s1 + $0x18] sm:$0xf]
  %v38 = vld [vmem:[%s1 + $0x1c] sm:$0xf]
  %v39 = vld [vmem:[%s1 + $0x20] sm:$0xf]
  %v40 = vld [vmem:[%s1 + $0x24] sm:$0xf]
  %v41 = vld [vmem:[%s1 + $0x28] sm:$0xf]
  %v42 = vld [vmem:[%s1 + $0x2c] sm:$0xf]
  %v43 = vld [vmem:[%s1 + $0x30] sm:$0xf]
  %v44 = vld [vmem:[%s1 + $0x34] sm:$0xf]
  %v45 = vld [vmem:[%s1 + $0x38] sm:$0xf]
  %v46 = vld [vmem:[%s1 + $0x3c] sm:$0xf]
  %v63 = vunpack.c.l.b16 %v15
  %v64 = vunpack.c.l.b16 %v16
  %v65 = vunpack.c.l.b16 %v17
  %v66 = vunpack.c.l.b16 %v18
  %v67 = vunpack.c.l.b16 %v19
  %v68 = vunpack.c.l.b16 %v20
  %v69 = vunpack.c.l.b16 %v21
  %v70 = vunpack.c.l.b16 %v22
  %v71 = vunpack.c.l.b16 %v23
  %v72 = vunpack.c.l.b16 %v24
  %v73 = vunpack.c.l.b16 %v25
  %v74 = vunpack.c.l.b16 %v26
  %v75 = vunpack.c.l.b16 %v27
  %v76 = vunpack.c.l.b16 %v28
  %v77 = vunpack.c.l.b16 %v29
  %v78 = vunpack.c.l.b16 %v30
  %v79 = vpack.c.b16 %v64, %v63
  %v80 = vpack.c.b16 %v66, %v65
  %v81 = vpack.c.b16 %v68, %v67
  %v82 = vpack.c.b16 %v70, %v69
  %v83 = vpack.c.b16 %v72, %v71
  %v84 = vpack.c.b16 %v74, %v73
  %v85 = vpack.c.b16 %v76, %v75
  %v86 = vpack.c.b16 %v78, %v77
  %v111 = vunpack.c.l.b16 %v31
  %v112 = vunpack.c.l.b16 %v32
  %v113 = vunpack.c.l.b16 %v33
  %v114 = vunpack.c.l.b16 %v34
  %v115 = vunpack.c.l.b16 %v35
  %v116 = vunpack.c.l.b16 %v36
  %v117 = vunpack.c.l.b16 %v37
  %v118 = vunpack.c.l.b16 %v38
  %v119 = vunpack.c.l.b16 %v39
  %v120 = vunpack.c.l.b16 %v40
  %v121 = vunpack.c.l.b16 %v41
  %v122 = vunpack.c.l.b16 %v42
  %v123 = vunpack.c.l.b16 %v43
  %v124 = vunpack.c.l.b16 %v44
  %v125 = vunpack.c.l.b16 %v45
  %v126 = vunpack.c.l.b16 %v46
  %v127 = vpack.c.b16 %v112, %v111
  %v128 = vpack.c.b16 %v114, %v113
  %v129 = vpack.c.b16 %v116, %v115
  %v130 = vpack.c.b16 %v118, %v117
  %v131 = vpack.c.b16 %v120, %v119
  %v132 = vpack.c.b16 %v122, %v121
  %v133 = vpack.c.b16 %v124, %v123
  %v134 = vpack.c.b16 %v126, %v125
  %143 = vmatpush.bf16.msra.mxu0 %v134
  %144 = vmatpush.bf16.msra.mxu0 %v133
  %145 = vmatpush.bf16.msra.mxu0 %v132
  %146 = vmatpush.bf16.msra.mxu0 %v131
  %147 = vmatpush.bf16.msra.mxu0 %v130
  %148 = vmatpush.bf16.msra.mxu0 %v129
  %149 = vmatpush.bf16.msra.mxu0 %v128
  %150 = vmatpush.bf16.msra.mxu0 %v127
  %151 = vmatmul.bf16.gmra.mxu0 %v79
  %v152 = vpop.f32.mrf.mxu0
  %v153 = vadd.f32 0.0, %v152
  %v154 = vpop.f32.mrf.mxu0
  %v155 = vadd.f32 0.0, %v154
  %156 = vmatmul.bf16.gmra.mxu0 %v80
  %v157 = vpop.f32.mrf.mxu0
  %v158 = vadd.f32 0.0, %v157
  %v159 = vpop.f32.mrf.mxu0
  %v160 = vadd.f32 0.0, %v159
  %161 = vmatmul.bf16.gmra.mxu0 %v81
  %v162 = vpop.f32.mrf.mxu0
  %v163 = vadd.f32 0.0, %v162
  %v164 = vpop.f32.mrf.mxu0
  %v165 = vadd.f32 0.0, %v164
  %166 = vmatmul.bf16.gmra.mxu0 %v82
  %v167 = vpop.f32.mrf.mxu0
  %v168 = vadd.f32 0.0, %v167
  %v169 = vpop.f32.mrf.mxu0
  %v170 = vadd.f32 0.0, %v169
  %171 = vmatmul.bf16.gmra.mxu0 %v83
  %v172 = vpop.f32.mrf.mxu0
  %v173 = vadd.f32 0.0, %v172
  %v174 = vpop.f32.mrf.mxu0
  %v175 = vadd.f32 0.0, %v174
  %176 = vmatmul.bf16.gmra.mxu0 %v84
  %v177 = vpop.f32.mrf.mxu0
  %v178 = vadd.f32 0.0, %v177
  %v179 = vpop.f32.mrf.mxu0
  %v180 = vadd.f32 0.0, %v179
  %181 = vmatmul.bf16.gmra.mxu0 %v85
  %v182 = vpop.f32.mrf.mxu0
  %v183 = vadd.f32 0.0, %v182
  %v184 = vpop.f32.mrf.mxu0
  %v185 = vadd.f32 0.0, %v184
  %186 = vmatmul.bf16.gmra.mxu0 %v86
  %v187 = vpop.f32.mrf.mxu0
  %v188 = vadd.f32 0.0, %v187
  %v189 = vpop.f32.mrf.mxu0
  %v190 = vadd.f32 0.0, %v189
  %191 = vdwg.mxu0
  %v192 = vmax.f32 %v153, 0.0
  %v193 = vmax.f32 %v155, 0.0
  %v194 = vmax.f32 %v158, 0.0
  %v195 = vmax.f32 %v160, 0.0
  %v196 = vmax.f32 %v163, 0.0
  %v197 = vmax.f32 %v165, 0.0
  %v198 = vmax.f32 %v168, 0.0
  %v199 = vmax.f32 %v170, 0.0
  %v200 = vmax.f32 %v173, 0.0
  %v201 = vmax.f32 %v175, 0.0
  %v202 = vmax.f32 %v178, 0.0
  %v203 = vmax.f32 %v180, 0.0
  %v204 = vmax.f32 %v183, 0.0
  %v205 = vmax.f32 %v185, 0.0
  %v206 = vmax.f32 %v188, 0.0
  %v207 = vmax.f32 %v190, 0.0
  %v208 = vpack.c.bf16 %v193, %v192
  %v209 = vpack.c.bf16 %v195, %v194
  %v210 = vpack.c.bf16 %v197, %v196
  %v211 = vpack.c.bf16 %v199, %v198
  %v212 = vpack.c.bf16 %v201, %v200
  %v213 = vpack.c.bf16 %v203, %v202
  %v214 = vpack.c.bf16 %v205, %v204
  %v215 = vpack.c.bf16 %v207, %v206
  %v216 = vld [vmem:[%s2] sm:$0xf]
  %v217 = vld [vmem:[%s2 + $0x4] sm:$0xf]
  %v218 = vld [vmem:[%s2 + $0x8] sm:$0xf]
  %v219 = vld [vmem:[%s2 + $0xc] sm:$0xf]
  %v224 = vunpack.c.l.b16 %v216
  %v225 = vunpack.c.l.b16 %v217
  %v226 = vunpack.c.l.b16 %v218
  %v227 = vunpack.c.l.b16 %v219
  %v228 = vpack.c.b16 %v225, %v224
  %v229 = vpack.c.b16 %v227, %v226
  %vm232 = vcmask 261120
  %v234 = vsel %vm232, %v208, 0
  %v237 = vsel %vm232, %v209, 0
  %v240 = vsel %vm232, %v210, 0
  %v243 = vsel %vm232, %v211, 0
  %v246 = vsel %vm232, %v212, 0
  %v249 = vsel %vm232, %v213, 0
  %v252 = vsel %vm232, %v214, 0
  %v255 = vsel %vm232, %v215, 0
  %257 = vmatpush.bf16.msra.mxu0 0
  %258 = vmatpush.bf16.msra.mxu0 0
  %259 = vmatpush.bf16.msra.mxu0 0
  %260 = vmatpush.bf16.msra.mxu0 0
  %261 = vmatpush.bf16.msra.mxu0 0
  %262 = vmatpush.bf16.msra.mxu0 0
  %263 = vmatpush.bf16.msra.mxu0 %v229
  %264 = vmatpush.bf16.msra.mxu0 %v228
  %265 = vmatmul.bf16.gmra.mxu0 %v234
  %v266 = vpop.f32.mrf.mxu0
  %v267 = vadd.f32 0.0, %v266
  %v268 = vpop.f32.mrf.mxu0
  %v269 = vadd.f32 0.0, %v268
  %270 = vmatmul.bf16.gmra.mxu0 %v237
  %v271 = vpop.f32.mrf.mxu0
  %v272 = vadd.f32 0.0, %v271
  %v273 = vpop.f32.mrf.mxu0
  %v274 = vadd.f32 0.0, %v273
  %275 = vmatmul.bf16.gmra.mxu0 %v240
  %v276 = vpop.f32.mrf.mxu0
  %v277 = vadd.f32 0.0, %v276
  %v278 = vpop.f32.mrf.mxu0
  %v279 = vadd.f32 0.0, %v278
  %280 = vmatmul.bf16.gmra.mxu0 %v243
  %v281 = vpop.f32.mrf.mxu0
  %v282 = vadd.f32 0.0, %v281
  %v283 = vpop.f32.mrf.mxu0
  %v284 = vadd.f32 0.0, %v283
  %285 = vmatmul.bf16.gmra.mxu0 %v246
  %v286 = vpop.f32.mrf.mxu0
  %v287 = vadd.f32 0.0, %v286
  %v288 = vpop.f32.mrf.mxu0
  %v289 = vadd.f32 0.0, %v288
  %290 = vmatmul.bf16.gmra.mxu0 %v249
  %v291 = vpop.f32.mrf.mxu0
  %v292 = vadd.f32 0.0, %v291
  %v293 = vpop.f32.mrf.mxu0
  %v294 = vadd.f32 0.0, %v293
  %295 = vmatmul.bf16.gmra.mxu0 %v252
  %v296 = vpop.f32.mrf.mxu0
  %v297 = vadd.f32 0.0, %v296
  %v298 = vpop.f32.mrf.mxu0
  %v299 = vadd.f32 0.0, %v298
  %300 = vmatmul.bf16.gmra.mxu0 %v255
  %v301 = vpop.f32.mrf.mxu0
  %v302 = vadd.f32 0.0, %v301
  %v303 = vpop.f32.mrf.mxu0
  %v304 = vadd.f32 0.0, %v303
  %305 = vdwg.mxu0
  %306 = vst [vmem:[%s3] sm:$0xff] %v267
  %307 = vst [vmem:[%s3 + $0x8] sm:$0xff] %v269
  %308 = vst [vmem:[%s3 + $0x10] sm:$0xff] %v272
  %309 = vst [vmem:[%s3 + $0x18] sm:$0xff] %v274
  %310 = vst [vmem:[%s3 + $0x20] sm:$0xff] %v277
  %311 = vst [vmem:[%s3 + $0x28] sm:$0xff] %v279
  %312 = vst [vmem:[%s3 + $0x30] sm:$0xff] %v282
  %313 = vst [vmem:[%s3 + $0x38] sm:$0xff] %v284
  %314 = vst [vmem:[%s3 + $0x40] sm:$0xff] %v287
  %315 = vst [vmem:[%s3 + $0x48] sm:$0xff] %v289
  %316 = vst [vmem:[%s3 + $0x50] sm:$0xff] %v292
  %317 = vst [vmem:[%s3 + $0x58] sm:$0xff] %v294
  %318 = vst [vmem:[%s3 + $0x60] sm:$0xff] %v297
  %319 = vst [vmem:[%s3 + $0x68] sm:$0xff] %v299
  %320 = vst [vmem:[%s3 + $0x70] sm:$0xff] %v302
  %321 = vst [vmem:[%s3 + $0x78] sm:$0xff] %v304
  // Predicated region
  $region14: #{adapter_linear_forward.2} parent=0 // pred_check
    _
  $region15: #{adapter_linear_forward.2} parent=0 // pred_check_branch
    %323 = sbr.rel (0) target = $region17
  $region16: #{adapter_linear_forward.2} parent=0 // pred_region
    _
  $region17: #{adapter_linear_forward.2} parent=0 // pred_fallthru
    _
  // Predicated region
  $region18: #{adapter_linear_forward.2} parent=0 // pred_check
    _
  $region19: #{adapter_linear_forward.2} parent=0 // pred_check_branch
    %325 = sbr.rel (0) target = $region21
  $region20: #{adapter_linear_forward.2} parent=0 // pred_region
    _
  $region21: #{adapter_linear_forward.2} parent=0 // pred_fallthru
    _

// kernel: reverse.0
$region0: #{reverse.0}
  %s0 = inlined_call_operand.vmem [shape: f32[2,4,16,63], index: 0, kind: input, shape index: {}]
  %s1 = inlined_call_operand.vmem [shape: f32[2,4,16,63], index: 1, kind: output, shape index: {}]
  %v2 = vlaneseq
  %v3 = vsub.s32 62, %v2
  %4 = vset.pattern.permute.xlu0 %v3
  $region1: #{reverse.0} parent=0
    #allocation0 [shape = 'u8[65536]{0}', space=vmem, size = 0x10000, scoped, tag = 'operand span for operand 0']
    #allocation1 [shape = 'u8[65536]{0}', space=vmem, size = 0x10000, scoped, tag = 'operand span for operand 1']
    // Predicated region
    $region2: #{reverse.0} parent=1 // pred_check
      _
    $region3: #{reverse.0} parent=1 // pred_check_branch
      %6 = sbr.rel (0) target = $region5
    $region4: #{reverse.0} parent=1 // pred_region
      // Predicated region
      $region6: #{reverse.0} parent=4 // pred_check
        _
      $region7: #{reverse.0} parent=4 // pred_check_branch
        %8 = sbr.rel (0) target = $region9
      $region8: #{reverse.0} parent=4 // pred_region
        // Predicated region
        $region21: #{reverse.0} parent=8 // pred_check
          _
        $region22: #{reverse.0} parent=8 // pred_check_branch
          %54 = sbr.rel (0) target = $region24
        $region23: #{reverse.0} parent=8 // pred_region
          loop: start=0, step=1, limit=1
          $region25: #{reverse.0} parent=23 // loop_pre_header
            _
          $region26: #{reverse.0} parent=23 // loop_header
            %s56 = sphi 0, %s60
            %p57 = scmp.ge.s32.totalorder %s56, 1
            %s61 = sphi %s0, %s0
            %s62 = sphi [#allocation0], [#allocation0]
          $region27: #{reverse.0} parent=23 // loop_header_branch
            %59 = sbr.rel (%p57) target = $region31
          $region28: #{reverse.0} parent=23 // loop_body
            %v63 = vld [vmem:[%s61] sm:$0xff]
            %64 = vst [vmem:[%s62] sm:$0xff] %v63
            %v65 = vld [vmem:[%s61 + $0x8] sm:$0xff]
            %66 = vst [vmem:[%s62 + $0x8] sm:$0xff] %v65
            %v67 = vld [vmem:[%s61 + $0x10] sm:$0xff]
            %68 = vst [vmem:[%s62 + $0x10] sm:$0xff] %v67
            %v69 = vld [vmem:[%s61 + $0x18] sm:$0xff]
            %70 = vst [vmem:[%s62 + $0x18] sm:$0xff] %v69
            %v71 = vld [vmem:[%s61 + $0x20] sm:$0xff]
            %72 = vst [vmem:[%s62 + $0x20] sm:$0xff] %v71
            %v73 = vld [vmem:[%s61 + $0x28] sm:$0xff]
            %74 = vst [vmem:[%s62 + $0x28] sm:$0xff] %v73
            %v75 = vld [vmem:[%s61 + $0x30] sm:$0xff]
            %76 = vst [vmem:[%s62 + $0x30] sm:$0xff] %v75
            %v77 = vld [vmem:[%s61 + $0x38] sm:$0xff]
            %78 = vst [vmem:[%s62 + $0x38] sm:$0xff] %v77
            %v79 = vld [vmem:[%s61 + $0x40] sm:$0xff]
            %80 = vst [vmem:[%s62 + $0x40] sm:$0xff] %v79
            %v81 = vld [vmem:[%s61 + $0x48] sm:$0xff]
            %82 = vst [vmem:[%s62 + $0x48] sm:$0xff] %v81
            %v83 = vld [vmem:[%s61 + $0x50] sm:$0xff]
            %84 = vst [vmem:[%s62 + $0x50] sm:$0xff] %v83
            %v85 = vld [vmem:[%s61 + $0x58] sm:$0xff]
            %86 = vst [vmem:[%s62 + $0x58] sm:$0xff] %v85
            %v87 = vld [vmem:[%s61 + $0x60] sm:$0xff]
            %88 = vst [vmem:[%s62 + $0x60] sm:$0xff] %v87
            %v89 = vld [vmem:[%s61 + $0x68] sm:$0xff]
            %90 = vst [vmem:[%s62 + $0x68] sm:$0xff] %v89
            %v91 = vld [vmem:[%s61 + $0x70] sm:$0xff]
            %92 = vst [vmem:[%s62 + $0x70] sm:$0xff] %v91
            %v93 = vld [vmem:[%s61 + $0x78] sm:$0xff]
            %94 = vst [vmem:[%s62 + $0x78] sm:$0xff] %v93
          $region29: #{reverse.0} parent=23 // loop_footer
            %s60 = sadd.s32 1, %s56
          $region30: #{reverse.0} parent=23 // loop_footer_branch
            %55 = sbr.rel target = $region26
          $region31: #{reverse.0} parent=23 // loop_exit
            _
        $region24: #{reverse.0} parent=8 // pred_fallthru
          _
        // Predicated region
        $region32: #{reverse.0} parent=8 // pred_check
          _
        $region33: #{reverse.0} parent=8 // pred_check_branch
          %96 = sbr.rel target = $region35
        $region34: #{reverse.0} parent=8 // pred_region
          _
        $region35: #{reverse.0} parent=8 // pred_fallthru
          _
      $region9: #{reverse.0} parent=4 // pred_fallthru
        _
      // Predicated region
      $region10: #{reverse.0} parent=4 // pred_check
        _
      $region11: #{reverse.0} parent=4 // pred_check_branch
        %10 = sbr.rel target = $region13
      $region12: #{reverse.0} parent=4 // pred_region
        %s12 = ssub.s32 256, 1
        loop: start=0, step=1, limit=1
        $region14: #{reverse.0} parent=12 // loop_pre_header
          _
        $region15: #{reverse.0} parent=12 // loop_header
          %s14 = sphi 0, %s18
          %p15 = scmp.ge.s32.totalorder %s14, 1
          %s19 = sphi %s0, %s0
          %s20 = sphi [#allocation0], [#allocation0]
        $region16: #{reverse.0} parent=12 // loop_header_branch
          %17 = sbr.rel (%p15) target = $region20
        $region17: #{reverse.0} parent=12 // loop_body
          %v21 = vld [vmem:[%s19] sm:%s12]
          %22 = vst [vmem:[%s20] sm:%s12] %v21
          %v23 = vld [vmem:[%s19 + $0x8] sm:%s12]
          %24 = vst [vmem:[%s20 + $0x8] sm:%s12] %v23
          %v25 = vld [vmem:[%s19 + $0x10] sm:%s12]
          %26 = vst [vmem:[%s20 + $0x10] sm:%s12] %v25
          %v27 = vld [vmem:[%s19 + $0x18] sm:%s12]
          %28 = vst [vmem:[%s20 + $0x18] sm:%s12] %v27
          %v29 = vld [vmem:[%s19 + $0x20] sm:%s12]
          %30 = vst [vmem:[%s20 + $0x20] sm:%s12] %v29
          %v31 = vld [vmem:[%s19 + $0x28] sm:%s12]
          %32 = vst [vmem:[%s20 + $0x28] sm:%s12] %v31
          %v33 = vld [vmem:[%s19 + $0x30] sm:%s12]
          %34 = vst [vmem:[%s20 + $0x30] sm:%s12] %v33
          %v35 = vld [vmem:[%s19 + $0x38] sm:%s12]
          %36 = vst [vmem:[%s20 + $0x38] sm:%s12] %v35
          %v37 = vld [vmem:[%s19 + $0x40] sm:%s12]
          %38 = vst [vmem:[%s20 + $0x40] sm:%s12] %v37
          %v39 = vld [vmem:[%s19 + $0x48] sm:%s12]
          %40 = vst [vmem:[%s20 + $0x48] sm:%s12] %v39
          %v41 = vld [vmem:[%s19 + $0x50] sm:%s12]
          %42 = vst [vmem:[%s20 + $0x50] sm:%s12] %v41
          %v43 = vld [vmem:[%s19 + $0x58] sm:%s12]
          %44 = vst [vmem:[%s20 + $0x58] sm:%s12] %v43
          %v45 = vld [vmem:[%s19 + $0x60] sm:%s12]
          %46 = vst [vmem:[%s20 + $0x60] sm:%s12] %v45
          %v47 = vld [vmem:[%s19 + $0x68] sm:%s12]
          %48 = vst [vmem:[%s20 + $0x68] sm:%s12] %v47
          %v49 = vld [vmem:[%s19 + $0x70] sm:%s12]
          %50 = vst [vmem:[%s20 + $0x70] sm:%s12] %v49
          %v51 = vld [vmem:[%s19 + $0x78] sm:%s12]
          %52 = vst [vmem:[%s20 + $0x78] sm:%s12] %v51
        $region18: #{reverse.0} parent=12 // loop_footer
          %s18 = sadd.s32 1, %s14
        $region19: #{reverse.0} parent=12 // loop_footer_branch
          %13 = sbr.rel target = $region15
        $region20: #{reverse.0} parent=12 // loop_exit
          _
      $region13: #{reverse.0} parent=4 // pred_fallthru
        _
    $region5: #{reverse.0} parent=1 // pred_fallthru
      _
    %97 = vnop
    %v98 = vld [vmem:[#allocation0] sm:$0xff]
    %99 = vperm.xlu0 %4, %v98
    %v100 = vpop.permute.xlu0 %99
    %101 = vst [vmem:[#allocation1] sm:$0xff] %v100
    %s102 = scalar_lea.vmem [#allocation1], 8
    %s103 = scalar_lea.vmem [#allocation0], 8
    %v104 = vld [vmem:[%s103] sm:$0xff]
    %105 = vperm.xlu0 %4, %v104
    %v106 = vpop.permute.xlu0 %105
    %107 = vst [vmem:[%s102] sm:$0xff] %v106
    %s108 = scalar_lea.vmem [#allocation1], 16
    %s109 = scalar_lea.vmem [#allocation0], 16
    %v110 = vld [vmem:[%s109] sm:$0xff]
    %111 = vperm.xlu0 %4, %v110
    %v112 = vpop.permute.xlu0 %111
    %113 = vst [vmem:[%s108] sm:$0xff] %v112
    %s114 = scalar_lea.vmem %s108, 8 [#allocation1]
    %s115 = scalar_lea.vmem %s109, 8 [#allocation0]
    %v116 = vld [vmem:[%s115] sm:$0xff]
    %117 = vperm.xlu0 %4, %v116
    %v118 = vpop.permute.xlu0 %117
    %119 = vst [vmem:[%s114] sm:$0xff] %v118
    %s120 = scalar_lea.vmem [#allocation1], 32
    %s121 = scalar_lea.vmem [#allocation0], 32
    %v122 = vld [vmem:[%s121] sm:$0xff]
    %123 = vperm.xlu0 %4, %v122
    %v124 = vpop.permute.xlu0 %123
    %125 = vst [vmem:[%s120] sm:$0xff] %v124
    %s126 = scalar_lea.vmem %s120, 8 [#allocation1]
    %s127 = scalar_lea.vmem %s121, 8 [#allocation0]
    %v128 = vld [vmem:[%s127] sm:$0xff]
    %129 = vperm.xlu0 %4, %v128
    %v130 = vpop.permute.xlu0 %129
    %131 = vst [vmem:[%s126] sm:$0xff] %v130
    %s132 = scalar_lea.vmem [#allocation1], 48
    %s133 = scalar_lea.vmem [#allocation0], 48
    %v134 = vld [vmem:[%s133] sm:$0xff]
    %135 = vperm.xlu0 %4, %v134
    %v136 = vpop.permute.xlu0 %135
    %137 = vst [vmem:[%s132] sm:$0xff] %v136
    %s138 = scalar_lea.vmem %s132, 8 [#allocation1]
    %s139 = scalar_lea.vmem %s133, 8 [#allocation0]
    %v140 = vld [vmem:[%s139] sm:$0xff]
    %141 = vperm.xlu0 %4, %v140
    %v142 = vpop.permute.xlu0 %141
    %143 = vst [vmem:[%s138] sm:$0xff] %v142
    %s144 = scalar_lea.vmem [#allocation1], 64
    %s145 = scalar_lea.vmem [#allocation0], 64
    %v146 = vld [vmem:[%s145] sm:$0xff]
    %147 = vperm.xlu0 %4, %v146
    %v148 = vpop.permute.xlu0 %147
    %149 = vst [vmem:[%s144] sm:$0xff] %v148
    %s150 = scalar_lea.vmem %s144, 8 [#allocation1]
    %s151 = scalar_lea.vmem %s145, 8 [#allocation0]
    %v152 = vld [vmem:[%s151] sm:$0xff]
    %153 = vperm.xlu0 %4, %v152
    %v154 = vpop.permute.xlu0 %153
    %155 = vst [vmem:[%s150] sm:$0xff] %v154
    %s156 = scalar_lea.vmem [#allocation1], 80
    %s157 = scalar_lea.vmem [#allocation0], 80
    %v158 = vld [vmem:[%s157] sm:$0xff]
    %159 = vperm.xlu0 %4, %v158
    %v160 = vpop.permute.xlu0 %159
    %161 = vst [vmem:[%s156] sm:$0xff] %v160
    %s162 = scalar_lea.vmem %s156, 8 [#allocation1]
    %s163 = scalar_lea.vmem %s157, 8 [#allocation0]
    %v164 = vld [vmem:[%s163] sm:$0xff]
    %165 = vperm.xlu0 %4, %v164
    %v166 = vpop.permute.xlu0 %165
    %167 = vst [vmem:[%s162] sm:$0xff] %v166
    %s168 = scalar_lea.vmem [#allocation1], 96
    %s169 = scalar_lea.vmem [#allocation0], 96
    %v170 = vld [vmem:[%s169] sm:$0xff]
    %171 = vperm.xlu0 %4, %v170
    %v172 = vpop.permute.xlu0 %171
    %173 = vst [vmem:[%s168] sm:$0xff] %v172
    %s174 = scalar_lea.vmem %s168, 8 [#allocation1]
    %s175 = scalar_lea.vmem %s169, 8 [#allocation0]
    %v176 = vld [vmem:[%s175] sm:$0xff]
    %177 = vperm.xlu0 %4, %v176
    %v178 = vpop.permute.xlu0 %177
    %179 = vst [vmem:[%s174] sm:$0xff] %v178
    %s180 = scalar_lea.vmem [#allocation1], 112
    %s181 = scalar_lea.vmem [#allocation0], 112
    %v182 = vld [vmem:[%s181] sm:$0xff]
    %183 = vperm.xlu0 %4, %v182
    %v184 = vpop.permute.xlu0 %183
    %185 = vst [vmem:[%s180] sm:$0xff] %v184
    %s186 = scalar_lea.vmem %s180, 8 [#allocation1]
    %s187 = scalar_lea.vmem %s181, 8 [#allocation0]
    %v188 = vld [vmem:[%s187] sm:$0xff]
    %189 = vperm.xlu0 %4, %v188
    %v190 = vpop.permute.xlu0 %189
    %191 = vst [vmem:[%s186] sm:$0xff] %v190
    // Predicated region
    $region36: #{reverse.0} parent=1 // pred_check
      _
    $region37: #{reverse.0} parent=1 // pred_check_branch
      %193 = sbr.rel (0) target = $region39
    $region38: #{reverse.0} parent=1 // pred_region
      // Predicated region
      $region40: #{reverse.0} parent=38 // pred_check
        _
      $region41: #{reverse.0} parent=38 // pred_check_branch
        %195 = sbr.rel (0) target = $region43
      $region42: #{reverse.0} parent=38 // pred_region
        // Predicated region
        $region55: #{reverse.0} parent=42 // pred_check
          _
        $region56: #{reverse.0} parent=42 // pred_check_branch
          %241 = sbr.rel (0) target = $region58
        $region57: #{reverse.0} parent=42 // pred_region
          loop: start=0, step=1, limit=1
          $region59: #{reverse.0} parent=57 // loop_pre_header
            _
          $region60: #{reverse.0} parent=57 // loop_header
            %s243 = sphi 0, %s247
            %p244 = scmp.ge.s32.totalorder %s243, 1
            %s248 = sphi [#allocation1], [#allocation1]
            %s249 = sphi %s1, %s1
          $region61: #{reverse.0} parent=57 // loop_header_branch
            %246 = sbr.rel (%p244) target = $region65
          $region62: #{reverse.0} parent=57 // loop_body
            %v250 = vld [vmem:[%s248] sm:$0xff]
            %251 = vst [vmem:[%s249] sm:$0xff] %v250
            %v252 = vld [vmem:[%s248 + $0x8] sm:$0xff]
            %253 = vst [vmem:[%s249 + $0x8] sm:$0xff] %v252
            %v254 = vld [vmem:[%s248 + $0x10] sm:$0xff]
            %255 = vst [vmem:[%s249 + $0x10] sm:$0xff] %v254
            %v256 = vld [vmem:[%s248 + $0x18] sm:$0xff]
            %257 = vst [vmem:[%s249 + $0x18] sm:$0xff] %v256
            %v258 = vld [vmem:[%s248 + $0x20] sm:$0xff]
            %259 = vst [vmem:[%s249 + $0x20] sm:$0xff] %v258
            %v260 = vld [vmem:[%s248 + $0x28] sm:$0xff]
            %261 = vst [vmem:[%s249 + $0x28] sm:$0xff] %v260
            %v262 = vld [vmem:[%s248 + $0x30] sm:$0xff]
            %263 = vst [vmem:[%s249 + $0x30] sm:$0xff] %v262
            %v264 = vld [vmem:[%s248 + $0x38] sm:$0xff]
            %265 = vst [vmem:[%s249 + $0x38] sm:$0xff] %v264
            %v266 = vld [vmem:[%s248 + $0x40] sm:$0xff]
            %267 = vst [vmem:[%s249 + $0x40] sm:$0xff] %v266
            %v268 = vld [vmem:[%s248 + $0x48] sm:$0xff]
            %269 = vst [vmem:[%s249 + $0x48] sm:$0xff] %v268
            %v270 = vld [vmem:[%s248 + $0x50] sm:$0xff]
            %271 = vst [vmem:[%s249 + $0x50] sm:$0xff] %v270
            %v272 = vld [vmem:[%s248 + $0x58] sm:$0xff]
            %273 = vst [vmem:[%s249 + $0x58] sm:$0xff] %v272
            %v274 = vld [vmem:[%s248 + $0x60] sm:$0xff]
            %275 = vst [vmem:[%s249 + $0x60] sm:$0xff] %v274
            %v276 = vld [vmem:[%s248 + $0x68] sm:$0xff]
            %277 = vst [vmem:[%s249 + $0x68] sm:$0xff] %v276
            %v278 = vld [vmem:[%s248 + $0x70] sm:$0xff]
            %279 = vst [vmem:[%s249 + $0x70] sm:$0xff] %v278
            %v280 = vld [vmem:[%s248 + $0x78] sm:$0xff]
            %281 = vst [vmem:[%s249 + $0x78] sm:$0xff] %v280
          $region63: #{reverse.0} parent=57 // loop_footer
            %s247 = sadd.s32 1, %s243
          $region64: #{reverse.0} parent=57 // loop_footer_branch
            %242 = sbr.rel target = $region60
          $region65: #{reverse.0} parent=57 // loop_exit
            _
        $region58: #{reverse.0} parent=42 // pred_fallthru
          _
        // Predicated region
        $region66: #{reverse.0} parent=42 // pred_check
          _
        $region67: #{reverse.0} parent=42 // pred_check_branch
          %283 = sbr.rel target = $region69
        $region68: #{reverse.0} parent=42 // pred_region
          _
        $region69: #{reverse.0} parent=42 // pred_fallthru
          _
      $region43: #{reverse.0} parent=38 // pred_fallthru
        _
      // Predicated region
      $region44: #{reverse.0} parent=38 // pred_check
        _
      $region45: #{reverse.0} parent=38 // pred_check_branch
        %197 = sbr.rel target = $region47
      $region46: #{reverse.0} parent=38 // pred_region
        %s199 = ssub.s32 256, 1
        loop: start=0, step=1, limit=1
        $region48: #{reverse.0} parent=46 // loop_pre_header
          _
        $region49: #{reverse.0} parent=46 // loop_header
          %s201 = sphi 0, %s205
          %p202 = scmp.ge.s32.totalorder %s201, 1
          %s206 = sphi [#allocation1], [#allocation1]
          %s207 = sphi %s1, %s1
        $region50: #{reverse.0} parent=46 // loop_header_branch
          %204 = sbr.rel (%p202) target = $region54
        $region51: #{reverse.0} parent=46 // loop_body
          %v208 = vld [vmem:[%s206] sm:%s199]
          %209 = vst [vmem:[%s207] sm:%s199] %v208
          %v210 = vld [vmem:[%s206 + $0x8] sm:%s199]
          %211 = vst [vmem:[%s207 + $0x8] sm:%s199] %v210
          %v212 = vld [vmem:[%s206 + $0x10] sm:%s199]
          %213 = vst [vmem:[%s207 + $0x10] sm:%s199] %v212
          %v214 = vld [vmem:[%s206 + $0x18] sm:%s199]
          %215 = vst [vmem:[%s207 + $0x18] sm:%s199] %v214
          %v216 = vld [vmem:[%s206 + $0x20] sm:%s199]
          %217 = vst [vmem:[%s207 + $0x20] sm:%s199] %v216
          %v218 = vld [vmem:[%s206 + $0x28] sm:%s199]
          %219 = vst [vmem:[%s207 + $0x28] sm:%s199] %v218
          %v220 = vld [vmem:[%s206 + $0x30] sm:%s199]
          %221 = vst [vmem:[%s207 + $0x30] sm:%s199] %v220
          %v222 = vld [vmem:[%s206 + $0x38] sm:%s199]
          %223 = vst [vmem:[%s207 + $0x38] sm:%s199] %v222
          %v224 = vld [vmem:[%s206 + $0x40] sm:%s199]
          %225 = vst [vmem:[%s207 + $0x40] sm:%s199] %v224
          %v226 = vld [vmem:[%s206 + $0x48] sm:%s199]
          %227 = vst [vmem:[%s207 + $0x48] sm:%s199] %v226
          %v228 = vld [vmem:[%s206 + $0x50] sm:%s199]
          %229 = vst [vmem:[%s207 + $0x50] sm:%s199] %v228
          %v230 = vld [vmem:[%s206 + $0x58] sm:%s199]
          %231 = vst [vmem:[%s207 + $0x58] sm:%s199] %v230
          %v232 = vld [vmem:[%s206 + $0x60] sm:%s199]
          %233 = vst [vmem:[%s207 + $0x60] sm:%s199] %v232
          %v234 = vld [vmem:[%s206 + $0x68] sm:%s199]
          %235 = vst [vmem:[%s207 + $0x68] sm:%s199] %v234
          %v236 = vld [vmem:[%s206 + $0x70] sm:%s199]
          %237 = vst [vmem:[%s207 + $0x70] sm:%s199] %v236
          %v238 = vld [vmem:[%s206 + $0x78] sm:%s199]
          %239 = vst [vmem:[%s207 + $0x78] sm:%s199] %v238
        $region52: #{reverse.0} parent=46 // loop_footer
          %s205 = sadd.s32 1, %s201
        $region53: #{reverse.0} parent=46 // loop_footer_branch
          %200 = sbr.rel target = $region49
        $region54: #{reverse.0} parent=46 // loop_exit
          _
      $region47: #{reverse.0} parent=38 // pred_fallthru
        _
    $region39: #{reverse.0} parent=1 // pred_fallthru
      _
    %284 = vnop

// kernel: adapter_linear_forward.3
$region0: #{adapter_linear_forward.3}
  #allocation0 [shape = 'u32[]', space=smem, size = 0x4, offset = 0x4, fixed_abs, tag = 'smem constant byte address 0x4 - core index']
  #allocation1 [shape = 'u32[72,128]{1,0:T(1,128)}', space=vmem, size = 0x9000, scoped, tag = 'internal scratch']
  %s0 = inlined_call_operand.vmem [shape: f32[2], index: 0, kind: input, shape index: {}]
  %s1 = inlined_call_operand.vmem [shape: f32[8,1040], index: 1, kind: input, shape index: {}]
  %s2 = inlined_call_operand.vmem [shape: f32[8,1040], index: 2, kind: input, shape index: {}]
  %s3 = inlined_call_operand.vmem [shape: f32[8,1040], index: 3, kind: input, shape index: {}]
  %s4 = inlined_call_operand.vmem [shape: f32[8,1040], index: 4, kind: input, shape index: {}]
  %s5 = inlined_call_operand.vmem [shape: f32[8,1040], index: 5, kind: output, shape index: {0}]
  %s6 = inlined_call_operand.vmem [shape: f32[8,1040], index: 6, kind: output, shape index: {1}]
  %7 = xla_tuple %s5, %s6
  %s8 = sld [smem:[#allocation0]]
  $region42: #{adapter_linear_forward.3} parent=0
    _
  %s10 = ssub.s32 1, %s8
  %s11 = scalar_select 0, %s10, %s8
  $region1: #{adapter_linear_forward.3} parent=0
    #allocation2 [shape = 'u8[512]{0}', space=smem, size = 0x200, scoped, tag = 'input window, operand 0, single buffered']
    #allocation3 [shape = 's32[1]{0}', space=sflag, size = 0x4, scoped, tag = 'scoped memory for adapter_linear_forward.3']
    %12 = vsyncpa [#allocation3], 0
    // Predicated region
    $region2: #{adapter_linear_forward.3} parent=1 // pred_check
      _
    $region3: #{adapter_linear_forward.3} parent=1 // pred_check_branch
      %14 = sbr.rel (0) target = $region5
    $region4: #{adapter_linear_forward.3} parent=1 // pred_region
      %16 = vsyncadd [#allocation3], 0
      %s18 = sshll.u32 %s0, 4
      %s19 = int_to_ptr.vmem [resolvable:$true] %s18
      %21 = dma.vmem_to_smem %s19, 16, [#allocation2], [#allocation3]
    $region5: #{adapter_linear_forward.3} parent=1 // pred_fallthru
      _
    // Predicated region
    $region6: #{adapter_linear_forward.3} parent=1 // pred_check
      _
    $region7: #{adapter_linear_forward.3} parent=1 // pred_check_branch
      %23 = sbr.rel (0) target = $region9
    $region8: #{adapter_linear_forward.3} parent=1 // pred_region
      _
    $region9: #{adapter_linear_forward.3} parent=1 // pred_fallthru
      _
    // Predicated region
    $region10: #{adapter_linear_forward.3} parent=1 // pred_check
      _
    $region11: #{adapter_linear_forward.3} parent=1 // pred_check_branch
      %25 = sbr.rel (0) target = $region13
    $region12: #{adapter_linear_forward.3} parent=1 // pred_region
      _
    $region13: #{adapter_linear_forward.3} parent=1 // pred_fallthru
      _
    // Predicated region
    $region14: #{adapter_linear_forward.3} parent=1 // pred_check
      _
    $region15: #{adapter_linear_forward.3} parent=1 // pred_check_branch
      %27 = sbr.rel (0) target = $region17
    $region16: #{adapter_linear_forward.3} parent=1 // pred_region
      _
    $region17: #{adapter_linear_forward.3} parent=1 // pred_fallthru
      _
    // Predicated region
    $region18: #{adapter_linear_forward.3} parent=1 // pred_check
      _
    $region19: #{adapter_linear_forward.3} parent=1 // pred_check_branch
      %29 = sbr.rel (0) target = $region21
    $region20: #{adapter_linear_forward.3} parent=1 // pred_region
      _
    $region21: #{adapter_linear_forward.3} parent=1 // pred_fallthru
      _
    // Predicated region
    $region22: #{adapter_linear_forward.3} parent=1 // pred_check
      _
    $region23: #{adapter_linear_forward.3} parent=1 // pred_check_branch
      %31 = sbr.rel (0) target = $region25
    $region24: #{adapter_linear_forward.3} parent=1 // pred_region
      %33 = dma.done [#allocation3], 16
    $region25: #{adapter_linear_forward.3} parent=1 // pred_fallthru
      _
    %34 = sfence
    %v35 = vld [vmem:[%s1] sm:$0xff]
    %v36 = vld [vmem:[%s1 + $0x8] sm:$0xff]
    %v37 = vld [vmem:[%s1 + $0x10] sm:$0xff]
    %v38 = vld [vmem:[%s1 + $0x18] sm:$0xff]
    %v39 = vld [vmem:[%s1 + $0x20] sm:$0xff]
    %v40 = vld [vmem:[%s1 + $0x28] sm:$0xff]
    %v41 = vld [vmem:[%s1 + $0x30] sm:$0xff]
    %v42 = vld [vmem:[%s1 + $0x38] sm:$0xff]
    %v43 = vld [vmem:[%s1 + $0x40] sm:$0xff]
    %v44 = vld [vmem:[%s2] sm:$0xff]
    %v45 = vld [vmem:[%s2 + $0x8] sm:$0xff]
    %v46 = vld [vmem:[%s2 + $0x10] sm:$0xff]
    %v47 = vld [vmem:[%s2 + $0x18] sm:$0xff]
    %v48 = vld [vmem:[%s2 + $0x20] sm:$0xff]
    %v49 = vld [vmem:[%s2 + $0x28] sm:$0xff]
    %v50 = vld [vmem:[%s2 + $0x30] sm:$0xff]
    %v51 = vld [vmem:[%s2 + $0x38] sm:$0xff]
    %v52 = vld [vmem:[%s2 + $0x40] sm:$0xff]
    %v53 = vld [vmem:[%s3] sm:$0xff]
    %v54 = vld [vmem:[%s3 + $0x8] sm:$0xff]
    %v55 = vld [vmem:[%s3 + $0x10] sm:$0xff]
    %v56 = vld [vmem:[%s3 + $0x18] sm:$0xff]
    %v57 = vld [vmem:[%s3 + $0x20] sm:$0xff]
    %v58 = vld [vmem:[%s3 + $0x28] sm:$0xff]
    %v59 = vld [vmem:[%s3 + $0x30] sm:$0xff]
    %v60 = vld [vmem:[%s3 + $0x38] sm:$0xff]
    %v61 = vld [vmem:[%s3 + $0x40] sm:$0xff]
    %v62 = vld [vmem:[%s4] sm:$0xff]
    %v63 = vld [vmem:[%s4 + $0x8] sm:$0xff]
    %v64 = vld [vmem:[%s4 + $0x10] sm:$0xff]
    %v65 = vld [vmem:[%s4 + $0x18] sm:$0xff]
    %v66 = vld [vmem:[%s4 + $0x20] sm:$0xff]
    %v67 = vld [vmem:[%s4 + $0x28] sm:$0xff]
    %v68 = vld [vmem:[%s4 + $0x30] sm:$0xff]
    %v69 = vld [vmem:[%s4 + $0x38] sm:$0xff]
    %v70 = vld [vmem:[%s4 + $0x40] sm:$0xff]
    %v71 = vmul.f32 %v35, %v35
    %v72 = vmul.f32 %v36, %v36
    %v73 = vmul.f32 %v37, %v37
    %v74 = vmul.f32 %v38, %v38
    %v75 = vmul.f32 %v39, %v39
    %v76 = vmul.f32 %v40, %v40
    %v77 = vmul.f32 %v41, %v41
    %v78 = vmul.f32 %v42, %v42
    %v79 = vmul.f32 %v43, %v43
    %v80 = vmul.f32 %v44, %v44
    %v81 = vmul.f32 %v45, %v45
    %v82 = vmul.f32 %v46, %v46
    %v83 = vmul.f32 %v47, %v47
    %v84 = vmul.f32 %v48, %v48
    %v85 = vmul.f32 %v49, %v49
    %v86 = vmul.f32 %v50, %v50
    %v87 = vmul.f32 %v51, %v51
    %v88 = vmul.f32 %v52, %v52
    %v89 = vadd.f32 %v71, %v80
    %v90 = vadd.f32 %v72, %v81
    %v91 = vadd.f32 %v73, %v82
    %v92 = vadd.f32 %v74, %v83
    %v93 = vadd.f32 %v75, %v84
    %v94 = vadd.f32 %v76, %v85
    %v95 = vadd.f32 %v77, %v86
    %v96 = vadd.f32 %v78, %v87
    %v97 = vadd.f32 %v79, %v88
    %vm98 = vcmp.lt.f32.partialorder %v89, 1e-05
    %vm99 = vcmp.lt.f32.partialorder %v90, 1e-05
    %vm100 = vcmp.lt.f32.partialorder %v91, 1e-05
    %vm101 = vcmp.lt.f32.partialorder %v92, 1e-05
    %vm102 = vcmp.lt.f32.partialorder %v93, 1e-05
    %vm103 = vcmp.lt.f32.partialorder %v94, 1e-05
    %vm104 = vcmp.lt.f32.partialorder %v95, 1e-05
    %vm105 = vcmp.lt.f32.partialorder %v96, 1e-05
    %vm106 = vcmp.lt.f32.partialorder %v97, 1e-05
    %vm107 = vcmp.gt.f32.partialorder %v89, -1e-05
    %vm108 = vcmp.gt.f32.partialorder %v90, -1e-05
    %vm109 = vcmp.gt.f32.partialorder %v91, -1e-05
    %vm110 = vcmp.gt.f32.partialorder %v92, -1e-05
    %vm111 = vcmp.gt.f32.partialorder %v93, -1e-05
    %vm112 = vcmp.gt.f32.partialorder %v94, -1e-05
    %vm113 = vcmp.gt.f32.partialorder %v95, -1e-05
    %vm114 = vcmp.gt.f32.partialorder %v96, -1e-05
    %vm115 = vcmp.gt.f32.partialorder %v97, -1e-05
    %vm116 = vmand %vm98, %vm107
    %vm117 = vmand %vm99, %vm108
    %vm118 = vmand %vm100, %vm109
    %vm119 = vmand %vm101, %vm110
    %vm120 = vmand %vm102, %vm111
    %vm121 = vmand %vm103, %vm112
    %vm122 = vmand %vm104, %vm113
    %vm123 = vmand %vm105, %vm114
    %vm124 = vmand %vm106, %vm115
    %v125 = vsel %vm116, 1e-05, %v89
    %v126 = vsel %vm117, 1e-05, %v90
    %v127 = vsel %vm118, 1e-05, %v91
    %v128 = vsel %vm119, 1e-05, %v92
    %v129 = vsel %vm120, 1e-05, %v93
    %v130 = vsel %vm121, 1e-05, %v94
    %v131 = vsel %vm122, 1e-05, %v95
    %v132 = vsel %vm123, 1e-05, %v96
    %v133 = vsel %vm124, 1e-05, %v97
    %v134 = vrsqrt.pop %v125
    %v135 = vmul.f32 %v134, %v125
    %v136 = vmul.f32 %v135, %v134
    %v137 = vmul.f32 0.5, %v136
    %v138 = vsub.f32 1.5, %v137
    %v139 = vmul.f32 %v134, %v138
    %v140 = vmul.f32 %v125, %v139
    %vm141 = vcmp.eq.f32.partialorder %v125, inf
    %v142 = vsel %vm141, %v125, %v140
    %vm143 = vcmp.eq.f32.partialorder %v125, 0.0
    %v144 = vand.u32 %v125, 2147483648
    %v145 = vsel %vm143, %v144, %v142
    %v146 = vrsqrt.pop %v126
    %v147 = vmul.f32 %v146, %v126
    %v148 = vmul.f32 %v147, %v146
    %v149 = vmul.f32 0.5, %v148
    %v150 = vsub.f32 1.5, %v149
    %v151 = vmul.f32 %v146, %v150
    %v152 = vmul.f32 %v126, %v151
    %vm153 = vcmp.eq.f32.partialorder %v126, inf
    %v154 = vsel %vm153, %v126, %v152
    %vm155 = vcmp.eq.f32.partialorder %v126, 0.0
    %v156 = vand.u32 %v126, 2147483648
    %v157 = vsel %vm155, %v156, %v154
    %v158 = vrsqrt.pop %v127
    %v159 = vmul.f32 %v158, %v127
    %v160 = vmul.f32 %v159, %v158
    %v161 = vmul.f32 0.5, %v160
    %v162 = vsub.f32 1.5, %v161
    %v163 = vmul.f32 %v158, %v162
    %v164 = vmul.f32 %v127, %v163
    %vm165 = vcmp.eq.f32.partialorder %v127, inf
    %v166 = vsel %vm165, %v127, %v164
    %vm167 = vcmp.eq.f32.partialorder %v127, 0.0
    %v168 = vand.u32 %v127, 2147483648
    %v169 = vsel %vm167, %v168, %v166
    %v170 = vrsqrt.pop %v128
    %v171 = vmul.f32 %v170, %v128
    %v172 = vmul.f32 %v171, %v170
    %v173 = vmul.f32 0.5, %v172
    %v174 = vsub.f32 1.5, %v173
    %v175 = vmul.f32 %v170, %v174
    %v176 = vmul.f32 %v128, %v175
    %vm177 = vcmp.eq.f32.partialorder %v128, inf
    %v178 = vsel %vm177, %v128, %v176
    %vm179 = vcmp.eq.f32.partialorder %v128, 0.0
    %v180 = vand.u32 %v128, 2147483648
    %v181 = vsel %vm179, %v180, %v178
    %v182 = vrsqrt.pop %v129
    %v183 = vmul.f32 %v182, %v129
    %v184 = vmul.f32 %v183, %v182
    %v185 = vmul.f32 0.5, %v184
    %v186 = vsub.f32 1.5, %v185
    %v187 = vmul.f32 %v182, %v186
    %v188 = vmul.f32 %v129, %v187
    %vm189 = vcmp.eq.f32.partialorder %v129, inf
    %v190 = vsel %vm189, %v129, %v188
    %vm191 = vcmp.eq.f32.partialorder %v129, 0.0
    %v192 = vand.u32 %v129, 2147483648
    %v193 = vsel %vm191, %v192, %v190
    %v194 = vrsqrt.pop %v130
    %v195 = vmul.f32 %v194, %v130
    %v196 = vmul.f32 %v195, %v194
    %v197 = vmul.f32 0.5, %v196
    %v198 = vsub.f32 1.5, %v197
    %v199 = vmul.f32 %v194, %v198
    %v200 = vmul.f32 %v130, %v199
    %vm201 = vcmp.eq.f32.partialorder %v130, inf
    %v202 = vsel %vm201, %v130, %v200
    %vm203 = vcmp.eq.f32.partialorder %v130, 0.0
    %v204 = vand.u32 %v130, 2147483648
    %v205 = vsel %vm203, %v204, %v202
    %v206 = vrsqrt.pop %v131
    %v207 = vmul.f32 %v206, %v131
    %v208 = vmul.f32 %v207, %v206
    %v209 = vmul.f32 0.5, %v208
    %v210 = vsub.f32 1.5, %v209
    %v211 = vmul.f32 %v206, %v210
    %v212 = vmul.f32 %v131, %v211
    %vm213 = vcmp.eq.f32.partialorder %v131, inf
    %v214 = vsel %vm213, %v131, %v212
    %vm215 = vcmp.eq.f32.partialorder %v131, 0.0
    %v216 = vand.u32 %v131, 2147483648
    %v217 = vsel %vm215, %v216, %v214
    %v218 = vrsqrt.pop %v132
    %v219 = vmul.f32 %v218, %v132
    %v220 = vmul.f32 %v219, %v218
    %v221 = vmul.f32 0.5, %v220
    %v222 = vsub.f32 1.5, %v221
    %v223 = vmul.f32 %v218, %v222
    %v224 = vmul.f32 %v132, %v223
    %vm225 = vcmp.eq.f32.partialorder %v132, inf
    %v226 = vsel %vm225, %v132, %v224
    %vm227 = vcmp.eq.f32.partialorder %v132, 0.0
    %v228 = vand.u32 %v132, 2147483648
    %v229 = vsel %vm227, %v228, %v226
    %v230 = vrsqrt.pop %v133
    %v231 = vmul.f32 %v230, %v133
    %v232 = vmul.f32 %v231, %v230
    %v233 = vmul.f32 0.5, %v232
    %v234 = vsub.f32 1.5, %v233
    %v235 = vmul.f32 %v230, %v234
    %v236 = vmul.f32 %v133, %v235
    %vm237 = vcmp.eq.f32.partialorder %v133, inf
    %v238 = vsel %vm237, %v133, %v236
    %vm239 = vcmp.eq.f32.partialorder %v133, 0.0
    %v240 = vand.u32 %v133, 2147483648
    %v241 = vsel %vm239, %v240, %v238
    %v242 = vmul.f32 %v53, %v53
    %v243 = vmul.f32 %v54, %v54
    %v244 = vmul.f32 %v55, %v55
    %v245 = vmul.f32 %v56, %v56
    %v246 = vmul.f32 %v57, %v57
    %v247 = vmul.f32 %v58, %v58
    %v248 = vmul.f32 %v59, %v59
    %v249 = vmul.f32 %v60, %v60
    %v250 = vmul.f32 %v61, %v61
    %v251 = vmul.f32 %v62, %v62
    %v252 = vmul.f32 %v63, %v63
    %v253 = vmul.f32 %v64, %v64
    %v254 = vmul.f32 %v65, %v65
    %v255 = vmul.f32 %v66, %v66
    %v256 = vmul.f32 %v67, %v67
    %v257 = vmul.f32 %v68, %v68
    %v258 = vmul.f32 %v69, %v69
    %v259 = vmul.f32 %v70, %v70
    %v260 = vadd.f32 %v242, %v251
    %v261 = vadd.f32 %v243, %v252
    %v262 = vadd.f32 %v244, %v253
    %v263 = vadd.f32 %v245, %v254
    %v264 = vadd.f32 %v246, %v255
    %v265 = vadd.f32 %v247, %v256
    %v266 = vadd.f32 %v248, %v257
    %v267 = vadd.f32 %v249, %v258
    %v268 = vadd.f32 %v250, %v259
    %vm269 = vcmp.lt.f32.partialorder %v260, 1e-05
    %vm270 = vcmp.lt.f32.partialorder %v261, 1e-05
    %vm271 = vcmp.lt.f32.partialorder %v262, 1e-05
    %vm272 = vcmp.lt.f32.partialorder %v263, 1e-05
    %vm273 = vcmp.lt.f32.partialorder %v264, 1e-05
    %vm274 = vcmp.lt.f32.partialorder %v265, 1e-05
    %vm275 = vcmp.lt.f32.partialorder %v266, 1e-05
    %vm276 = vcmp.lt.f32.partialorder %v267, 1e-05
    %vm277 = vcmp.lt.f32.partialorder %v268, 1e-05
    %vm278 = vcmp.gt.f32.partialorder %v260, -1e-05
    %vm279 = vcmp.gt.f32.partialorder %v261, -1e-05
    %vm280 = vcmp.gt.f32.partialorder %v262, -1e-05
    %vm281 = vcmp.gt.f32.partialorder %v263, -1e-05
    %vm282 = vcmp.gt.f32.partialorder %v264, -1e-05
    %vm283 = vcmp.gt.f32.partialorder %v265, -1e-05
    %vm284 = vcmp.gt.f32.partialorder %v266, -1e-05
    %vm285 = vcmp.gt.f32.partialorder %v267, -1e-05
    %vm286 = vcmp.gt.f32.partialorder %v268, -1e-05
    %vm287 = vmand %vm269, %vm278
    %vm288 = vmand %vm270, %vm279
    %vm289 = vmand %vm271, %vm280
    %vm290 = vmand %vm272, %vm281
    %vm291 = vmand %vm273, %vm282
    %vm292 = vmand %vm274, %vm283
    %vm293 = vmand %vm275, %vm284
    %vm294 = vmand %vm276, %vm285
    %vm295 = vmand %vm277, %vm286
    %v296 = vsel %vm287, 1e-05, %v260
    %v297 = vsel %vm288, 1e-05, %v261
    %v298 = vsel %vm289, 1e-05, %v262
    %v299 = vsel %vm290, 1e-05, %v263
    %v300 = vsel %vm291, 1e-05, %v264
    %v301 = vsel %vm292, 1e-05, %v265
    %v302 = vsel %vm293, 1e-05, %v266
    %v303 = vsel %vm294, 1e-05, %v267
    %v304 = vsel %vm295, 1e-05, %v268
    %v305 = vrsqrt.pop %v296
    %v306 = vmul.f32 %v305, %v296
    %v307 = vmul.f32 %v306, %v305
    %v308 = vmul.f32 0.5, %v307
    %v309 = vsub.f32 1.5, %v308
    %v310 = vmul.f32 %v305, %v309
    %v311 = vmul.f32 %v296, %v310
    %vm312 = vcmp.eq.f32.partialorder %v296, inf
    %v313 = vsel %vm312, %v296, %v311
    %vm314 = vcmp.eq.f32.partialorder %v296, 0.0
    %v315 = vand.u32 %v296, 2147483648
    %v316 = vsel %vm314, %v315, %v313
    %v317 = vrsqrt.pop %v297
    %v318 = vmul.f32 %v317, %v297
    %v319 = vmul.f32 %v318, %v317
    %v320 = vmul.f32 0.5, %v319
    %v321 = vsub.f32 1.5, %v320
    %v322 = vmul.f32 %v317, %v321
    %v323 = vmul.f32 %v297, %v322
    %vm324 = vcmp.eq.f32.partialorder %v297, inf
    %v325 = vsel %vm324, %v297, %v323
    %vm326 = vcmp.eq.f32.partialorder %v297, 0.0
    %v327 = vand.u32 %v297, 2147483648
    %v328 = vsel %vm326, %v327, %v325
    %v329 = vrsqrt.pop %v298
    %v330 = vmul.f32 %v329, %v298
    %v331 = vmul.f32 %v330, %v329
    %v332 = vmul.f32 0.5, %v331
    %v333 = vsub.f32 1.5, %v332
    %v334 = vmul.f32 %v329, %v333
    %v335 = vmul.f32 %v298, %v334
    %vm336 = vcmp.eq.f32.partialorder %v298, inf
    %v337 = vsel %vm336, %v298, %v335
    %vm338 = vcmp.eq.f32.partialorder %v298, 0.0
    %v339 = vand.u32 %v298, 2147483648
    %v340 = vsel %vm338, %v339, %v337
    %v341 = vrsqrt.pop %v299
    %v342 = vmul.f32 %v341, %v299
    %v343 = vmul.f32 %v342, %v341
    %v344 = vmul.f32 0.5, %v343
    %v345 = vsub.f32 1.5, %v344
    %v346 = vmul.f32 %v341, %v345
    %v347 = vmul.f32 %v299, %v346
    %vm348 = vcmp.eq.f32.partialorder %v299, inf
    %v349 = vsel %vm348, %v299, %v347
    %vm350 = vcmp.eq.f32.partialorder %v299, 0.0
    %v351 = vand.u32 %v299, 2147483648
    %v352 = vsel %vm350, %v351, %v349
    %v353 = vrsqrt.pop %v300
    %v354 = vmul.f32 %v353, %v300
    %v355 = vmul.f32 %v354, %v353
    %v356 = vmul.f32 0.5, %v355
    %v357 = vsub.f32 1.5, %v356
    %v358 = vmul.f32 %v353, %v357
    %v359 = vmul.f32 %v300, %v358
    %vm360 = vcmp.eq.f32.partialorder %v300, inf
    %v361 = vsel %vm360, %v300, %v359
    %vm362 = vcmp.eq.f32.partialorder %v300, 0.0
    %v363 = vand.u32 %v300, 2147483648
    %v364 = vsel %vm362, %v363, %v361
    %v365 = vrsqrt.pop %v301
    %v366 = vmul.f32 %v365, %v301
    %v367 = vmul.f32 %v366, %v365
    %v368 = vmul.f32 0.5, %v367
    %v369 = vsub.f32 1.5, %v368
    %v370 = vmul.f32 %v365, %v369
    %v371 = vmul.f32 %v301, %v370
    %vm372 = vcmp.eq.f32.partialorder %v301, inf
    %v373 = vsel %vm372, %v301, %v371
    %vm374 = vcmp.eq.f32.partialorder %v301, 0.0
    %v375 = vand.u32 %v301, 2147483648
    %v376 = vsel %vm374, %v375, %v373
    %v377 = vrsqrt.pop %v302
    %v378 = vmul.f32 %v377, %v302
    %v379 = vmul.f32 %v378, %v377
    %v380 = vmul.f32 0.5, %v379
    %v381 = vsub.f32 1.5, %v380
    %v382 = vmul.f32 %v377, %v381
    %v383 = vmul.f32 %v302, %v382
    %vm384 = vcmp.eq.f32.partialorder %v302, inf
    %v385 = vsel %vm384, %v302, %v383
    %vm386 = vcmp.eq.f32.partialorder %v302, 0.0
    %v387 = vand.u32 %v302, 2147483648
    %v388 = vsel %vm386, %v387, %v385
    %v389 = vrsqrt.pop %v303
    %v390 = vmul.f32 %v389, %v303
    %v391 = vmul.f32 %v390, %v389
    %v392 = vmul.f32 0.5, %v391
    %v393 = vsub.f32 1.5, %v392
    %v394 = vmul.f32 %v389, %v393
    %v395 = vmul.f32 %v303, %v394
    %vm396 = vcmp.eq.f32.partialorder %v303, inf
    %v397 = vsel %vm396, %v303, %v395
    %vm398 = vcmp.eq.f32.partialorder %v303, 0.0
    %v399 = vand.u32 %v303, 2147483648
    %v400 = vsel %vm398, %v399, %v397
    %v401 = vrsqrt.pop %v304
    %v402 = vmul.f32 %v401, %v304
    %v403 = vmul.f32 %v402, %v401
    %v404 = vmul.f32 0.5, %v403
    %v405 = vsub.f32 1.5, %v404
    %v406 = vmul.f32 %v401, %v405
    %v407 = vmul.f32 %v304, %v406
    %vm408 = vcmp.eq.f32.partialorder %v304, inf
    %v409 = vsel %vm408, %v304, %v407
    %vm410 = vcmp.eq.f32.partialorder %v304, 0.0
    %v411 = vand.u32 %v304, 2147483648
    %v412 = vsel %vm410, %v411, %v409
    %s413 = sld [smem:[#allocation2]]
    %v414 = vstv %s413
    %v415 = vmul.f32 %v316, %v414
    %v416 = vmul.f32 %v328, %v414
    %v417 = vmul.f32 %v340, %v414
    %v418 = vmul.f32 %v352, %v414
    %v419 = vmul.f32 %v364, %v414
    %v420 = vmul.f32 %v376, %v414
    %v421 = vmul.f32 %v388, %v414
    %v422 = vmul.f32 %v400, %v414
    %v423 = vmul.f32 %v412, %v414
    %s424 = sld [smem:[#allocation2 + $0x1]]
    %v425 = vstv %s424
    %v426 = vmul.f32 %v145, %v425
    %v427 = vmul.f32 %v157, %v425
    %v428 = vmul.f32 %v169, %v425
    %v429 = vmul.f32 %v181, %v425
    %v430 = vmul.f32 %v193, %v425
    %v431 = vmul.f32 %v205, %v425
    %v432 = vmul.f32 %v217, %v425
    %v433 = vmul.f32 %v229, %v425
    %v434 = vmul.f32 %v241, %v425
    %v435 = vadd.f32 %v415, %v426
    %v436 = vadd.f32 %v416, %v427
    %v437 = vadd.f32 %v417, %v428
    %v438 = vadd.f32 %v418, %v429
    %v439 = vadd.f32 %v419, %v430
    %v440 = vadd.f32 %v420, %v431
    %v441 = vadd.f32 %v421, %v432
    %v442 = vadd.f32 %v422, %v433
    %v443 = vadd.f32 %v423, %v434
    %v444 = vmul.f32 %v435, 0.022097087
    %v445 = vmul.f32 %v436, 0.022097087
    %v446 = vmul.f32 %v437, 0.022097087
    %v447 = vmul.f32 %v438, 0.022097087
    %v448 = vmul.f32 %v439, 0.022097087
    %v449 = vmul.f32 %v440, 0.022097087
    %v450 = vmul.f32 %v441, 0.022097087
    %v451 = vmul.f32 %v442, 0.022097087
    %v452 = vmul.f32 %v443, 0.022097087
    %vm453 = vcmp.lt.f32.partialorder %v35, 1e-05
    %vm454 = vcmp.lt.f32.partialorder %v36, 1e-05
    %vm455 = vcmp.lt.f32.partialorder %v37, 1e-05
    %vm456 = vcmp.lt.f32.partialorder %v38, 1e-05
    %vm457 = vcmp.lt.f32.partialorder %v39, 1e-05
    %vm458 = vcmp.lt.f32.partialorder %v40, 1e-05
    %vm459 = vcmp.lt.f32.partialorder %v41, 1e-05
    %vm460 = vcmp.lt.f32.partialorder %v42, 1e-05
    %vm461 = vcmp.lt.f32.partialorder %v43, 1e-05
    %vm462 = vcmp.gt.f32.partialorder %v35, -1e-05
    %vm463 = vcmp.gt.f32.partialorder %v36, -1e-05
    %vm464 = vcmp.gt.f32.partialorder %v37, -1e-05
    %vm465 = vcmp.gt.f32.partialorder %v38, -1e-05
    %vm466 = vcmp.gt.f32.partialorder %v39, -1e-05
    %vm467 = vcmp.gt.f32.partialorder %v40, -1e-05
    %vm468 = vcmp.gt.f32.partialorder %v41, -1e-05
    %vm469 = vcmp.gt.f32.partialorder %v42, -1e-05
    %vm470 = vcmp.gt.f32.partialorder %v43, -1e-05
    %vm471 = vmand %vm453, %vm462
    %vm472 = vmand %vm454, %vm463
    %vm473 = vmand %vm455, %vm464
    %vm474 = vmand %vm456, %vm465
    %vm475 = vmand %vm457, %vm466
    %vm476 = vmand %vm458, %vm467
    %vm477 = vmand %vm459, %vm468
    %vm478 = vmand %vm460, %vm469
    %vm479 = vmand %vm461, %vm470
    %v480 = vsel %vm471, 1e-05, %v35
    %v481 = vsel %vm472, 1e-05, %v36
    %v482 = vsel %vm473, 1e-05, %v37
    %v483 = vsel %vm474, 1e-05, %v38
    %v484 = vsel %vm475, 1e-05, %v39
    %v485 = vsel %vm476, 1e-05, %v40
    %v486 = vsel %vm477, 1e-05, %v41
    %v487 = vsel %vm478, 1e-05, %v42
    %v488 = vsel %vm479, 1e-05, %v43
    %v489 = vmul.f32 %v480, %v480
    %v490 = vmul.f32 %v481, %v481
    %v491 = vmul.f32 %v482, %v482
    %v492 = vmul.f32 %v483, %v483
    %v493 = vmul.f32 %v484, %v484
    %v494 = vmul.f32 %v485, %v485
    %v495 = vmul.f32 %v486, %v486
    %v496 = vmul.f32 %v487, %v487
    %v497 = vmul.f32 %v488, %v488
    %v498 = vadd.f32 %v489, %v80
    %v499 = vadd.f32 %v490, %v81
    %v500 = vadd.f32 %v491, %v82
    %v501 = vadd.f32 %v492, %v83
    %v502 = vadd.f32 %v493, %v84
    %v503 = vadd.f32 %v494, %v85
    %v504 = vadd.f32 %v495, %v86
    %v505 = vadd.f32 %v496, %v87
    %v506 = vadd.f32 %v497, %v88
    %v507 = vrsqrt.pop %v498
    %v508 = vmul.f32 %v507, %v498
    %v509 = vmul.f32 %v508, %v507
    %v510 = vmul.f32 0.5, %v509
    %v511 = vsub.f32 1.5, %v510
    %v512 = vmul.f32 %v507, %v511
    %vm513 = vweird.f32 %v498
    %vm514 = vweird.f32 %v507
    %vm515 = vmor %vm513, %vm514
    %v516 = vsel %vm515, %v507, %v512
    %v517 = vrsqrt.pop %v499
    %v518 = vmul.f32 %v517, %v499
    %v519 = vmul.f32 %v518, %v517
    %v520 = vmul.f32 0.5, %v519
    %v521 = vsub.f32 1.5, %v520
    %v522 = vmul.f32 %v517, %v521
    %vm523 = vweird.f32 %v499
    %vm524 = vweird.f32 %v517
    %vm525 = vmor %vm523, %vm524
    %v526 = vsel %vm525, %v517, %v522
    %v527 = vrsqrt.pop %v500
    %v528 = vmul.f32 %v527, %v500
    %v529 = vmul.f32 %v528, %v527
    %v530 = vmul.f32 0.5, %v529
    %v531 = vsub.f32 1.5, %v530
    %v532 = vmul.f32 %v527, %v531
    %vm533 = vweird.f32 %v500
    %vm534 = vweird.f32 %v527
    %vm535 = vmor %vm533, %vm534
    %v536 = vsel %vm535, %v527, %v532
    %v537 = vrsqrt.pop %v501
    %v538 = vmul.f32 %v537, %v501
    %v539 = vmul.f32 %v538, %v537
    %v540 = vmul.f32 0.5, %v539
    %v541 = vsub.f32 1.5, %v540
    %v542 = vmul.f32 %v537, %v541
    %vm543 = vweird.f32 %v501
    %vm544 = vweird.f32 %v537
    %vm545 = vmor %vm543, %vm544
    %v546 = vsel %vm545, %v537, %v542
    %v547 = vrsqrt.pop %v502
    %v548 = vmul.f32 %v547, %v502
    %v549 = vmul.f32 %v548, %v547
    %v550 = vmul.f32 0.5, %v549
    %v551 = vsub.f32 1.5, %v550
    %v552 = vmul.f32 %v547, %v551
    %vm553 = vweird.f32 %v502
    %vm554 = vweird.f32 %v547
    %vm555 = vmor %vm553, %vm554
    %v556 = vsel %vm555, %v547, %v552
    %v557 = vrsqrt.pop %v503
    %v558 = vmul.f32 %v557, %v503
    %v559 = vmul.f32 %v558, %v557
    %v560 = vmul.f32 0.5, %v559
    %v561 = vsub.f32 1.5, %v560
    %v562 = vmul.f32 %v557, %v561
    %vm563 = vweird.f32 %v503
    %vm564 = vweird.f32 %v557
    %vm565 = vmor %vm563, %vm564
    %v566 = vsel %vm565, %v557, %v562
    %v567 = vrsqrt.pop %v504
    %v568 = vmul.f32 %v567, %v504
    %v569 = vmul.f32 %v568, %v567
    %v570 = vmul.f32 0.5, %v569
    %v571 = vsub.f32 1.5, %v570
    %v572 = vmul.f32 %v567, %v571
    %vm573 = vweird.f32 %v504
    %vm574 = vweird.f32 %v567
    %vm575 = vmor %vm573, %vm574
    %v576 = vsel %vm575, %v567, %v572
    %v577 = vrsqrt.pop %v505
    %v578 = vmul.f32 %v577, %v505
    %v579 = vmul.f32 %v578, %v577
    %v580 = vmul.f32 0.5, %v579
    %v581 = vsub.f32 1.5, %v580
    %v582 = vmul.f32 %v577, %v581
    %vm583 = vweird.f32 %v505
    %vm584 = vweird.f32 %v577
    %vm585 = vmor %vm583, %vm584
    %v586 = vsel %vm585, %v577, %v582
    %v587 = vrsqrt.pop %v506
    %v588 = vmul.f32 %v587, %v506
    %v589 = vmul.f32 %v588, %v587
    %v590 = vmul.f32 0.5, %v589
    %v591 = vsub.f32 1.5, %v590
    %v592 = vmul.f32 %v587, %v591
    %vm593 = vweird.f32 %v506
    %vm594 = vweird.f32 %v587
    %vm595 = vmor %vm593, %vm594
    %v596 = vsel %vm595, %v587, %v592
    %v597 = vmul.f32 %v480, %v516
    %v598 = vmul.f32 %v481, %v526
    %v599 = vmul.f32 %v482, %v536
    %v600 = vmul.f32 %v483, %v546
    %v601 = vmul.f32 %v484, %v556
    %v602 = vmul.f32 %v485, %v566
    %v603 = vmul.f32 %v486, %v576
    %v604 = vmul.f32 %v487, %v586
    %v605 = vmul.f32 %v488, %v596
    %v606 = vmul.f32 %v597, %v444
    %v607 = vmul.f32 %v598, %v445
    %v608 = vmul.f32 %v599, %v446
    %v609 = vmul.f32 %v600, %v447
    %v610 = vmul.f32 %v601, %v448
    %v611 = vmul.f32 %v602, %v449
    %v612 = vmul.f32 %v603, %v450
    %v613 = vmul.f32 %v604, %v451
    %v614 = vmul.f32 %v605, %v452
    %615 = vst [vmem:[%s5] sm:$0xff] %v606
    %616 = vst [vmem:[%s5 + $0x8] sm:$0xff] %v607
    %617 = vst [vmem:[%s5 + $0x10] sm:$0xff] %v608
    %618 = vst [vmem:[%s5 + $0x18] sm:$0xff] %v609
    %619 = vst [vmem:[%s5 + $0x20] sm:$0xff] %v610
    %620 = vst [vmem:[%s5 + $0x28] sm:$0xff] %v611
    %621 = vst [vmem:[%s5 + $0x30] sm:$0xff] %v612
    %622 = vst [vmem:[%s5 + $0x38] sm:$0xff] %v613
    %vm623 = vcmask 130048
    %624 = vst.msk [vmem:[%s5 + $0x40] sm:$0xff] %vm623, %v614
    %v625 = vmul.f32 %v44, %v516
    %v626 = vmul.f32 %v45, %v526
    %v627 = vmul.f32 %v46, %v536
    %v628 = vmul.f32 %v47, %v546
    %v629 = vmul.f32 %v48, %v556
    %v630 = vmul.f32 %v49, %v566
    %v631 = vmul.f32 %v50, %v576
    %v632 = vmul.f32 %v51, %v586
    %v633 = vmul.f32 %v52, %v596
    %v634 = vmul.f32 %v625, %v444
    %v635 = vmul.f32 %v626, %v445
    %v636 = vmul.f32 %v627, %v446
    %v637 = vmul.f32 %v628, %v447
    %v638 = vmul.f32 %v629, %v448
    %v639 = vmul.f32 %v630, %v449
    %v640 = vmul.f32 %v631, %v450
    %v641 = vmul.f32 %v632, %v451
    %v642 = vmul.f32 %v633, %v452
    %643 = vst [vmem:[%s6] sm:$0xff] %v634
    %644 = vst [vmem:[%s6 + $0x8] sm:$0xff] %v635
    %645 = vst [vmem:[%s6 + $0x10] sm:$0xff] %v636
    %646 = vst [vmem:[%s6 + $0x18] sm:$0xff] %v637
    %647 = vst [vmem:[%s6 + $0x20] sm:$0xff] %v638
    %648 = vst [vmem:[%s6 + $0x28] sm:$0xff] %v639
    %649 = vst [vmem:[%s6 + $0x30] sm:$0xff] %v640
    %650 = vst [vmem:[%s6 + $0x38] sm:$0xff] %v641
    %651 = vst.msk [vmem:[%s6 + $0x40] sm:$0xff] %vm623, %v642
    // Predicated region
    $region26: #{adapter_linear_forward.3} parent=1 // pred_check
      _
    $region27: #{adapter_linear_forward.3} parent=1 // pred_check_branch
      %653 = sbr.rel (0) target = $region29
    $region28: #{adapter_linear_forward.3} parent=1 // pred_region
      _
    $region29: #{adapter_linear_forward.3} parent=1 // pred_fallthru
      _
    // Predicated region
    $region30: #{adapter_linear_forward.3} parent=1 // pred_check
      _
    $region31: #{adapter_linear_forward.3} parent=1 // pred_check_branch
      %655 = sbr.rel (0) target = $region33
    $region32: #{adapter_linear_forward.3} parent=1 // pred_region
      _
    $region33: #{adapter_linear_forward.3} parent=1 // pred_fallthru
      _
    // Predicated region
    $region34: #{adapter_linear_forward.3} parent=1 // pred_check
      _
    $region35: #{adapter_linear_forward.3} parent=1 // pred_check_branch
      %657 = sbr.rel (0) target = $region37
    $region36: #{adapter_linear_forward.3} parent=1 // pred_region
      _
    $region37: #{adapter_linear_forward.3} parent=1 // pred_fallthru
      _
    // Predicated region
    $region38: #{adapter_linear_forward.3} parent=1 // pred_check
      _
    $region39: #{adapter_linear_forward.3} parent=1 // pred_check_branch
      %659 = sbr.rel (0) target = $region41
    $region40: #{adapter_linear_forward.3} parent=1 // pred_region
      _
    $region41: #{adapter_linear_forward.3} parent=1 // pred_fallthru
      _
    %660 = vsyncpa [#allocation3], 1

</llo_original>
